<compile_context>
chip_gen: v7x
topology: tpu7x:2x2x1
jax: 0.10.0
libtpu: 0.0.40
codegen_flags: <defaults>
</compile_context>

<pallas_src>
import functools

import jax
import jax.numpy as jnp
from jax.experimental import pallas as pl
from jax.experimental.pallas import tpu as pltpu  # noqa: F401  (TPU backend)


# ----------------------------------------------------------------------------
# Kernel
# ----------------------------------------------------------------------------
def _gelu(x):
    return 0.5 * x * (1.0 + jnp.tanh(0.7978845608028654 * (x + 0.044715 * x * x * x)))


def _softplus(x):
    # numerically stable log(1 + exp(x))
    return jnp.maximum(x, 0.0) + jnp.log1p(jnp.exp(-jnp.abs(x)))


def fused_forward_kernel(patch_ref, posenc_ref, pemb_ref, nemb_ref,
                         wp_ref, wq_ref, wk_ref, wv_ref, wo_ref,
                         w1_ref, w2_ref, wi_ref, loss_ref, *, B, T, Kn):
    """Single-step fused forward.

    patch_ref : (B*T, P)   bf16   flattened patch tokens
    posenc_ref: (T, D)     f32    positional encodings
    pemb_ref  : (B, E)     bf16   gathered positive-item embeddings
    nemb_ref  : (B*Kn, E)  bf16   gathered negative-item embeddings
    w*_ref    : bf16 weights
    loss_ref  : (1, 1)     f32    scalar loss output
    """
    f32 = jnp.float32
    bf16 = jnp.bfloat16

    def mm(a, w_ref):
        # bf16 x bf16 on the MXU, f32 accumulation.
        return jnp.dot(a.astype(bf16), w_ref[...], preferred_element_type=f32)

    # ----------------------- user encoder (ViT-style) -----------------------
    x = patch_ref[...]                                        # (B*T, P) bf16
    tok = mm(x, wp_ref)                                       # (B*T, D) f32
    D = tok.shape[-1]
    tok = (tok.reshape(B, T, D) + posenc_ref[...][None, :, :]).reshape(B * T, D)

    q = mm(tok, wq_ref).reshape(B, T, D)
    k = mm(tok, wk_ref).reshape(B, T, D)
    v = mm(tok, wv_ref).reshape(B, T, D)

    # attention scores: contraction over D absorbs the transpose (no k.T copy)
    s = jnp.einsum('btd,bsd->bts', q.astype(bf16), k.astype(bf16),
                   preferred_element_type=f32) * (1.0 / (float(D) ** 0.5))
    s = s - jnp.max(s, axis=-1, keepdims=True)
    p = jnp.exp(s)
    attn = p * pl.reciprocal(jnp.sum(p, axis=-1, keepdims=True), approx=True)
    ctx = jnp.einsum('bts,bsd->btd', attn.astype(bf16), v.astype(bf16),
                     preferred_element_type=f32).reshape(B * T, D)

    h = tok + mm(ctx, wo_ref)                                 # (B*T, D) f32
    h = h + mm(_gelu(mm(h, w1_ref)), w2_ref)                  # (B*T, D) f32
    user = jnp.mean(h.reshape(B, T, D), axis=1)               # (B, D)   f32

    # ------------------ item encoder: embedding -> linear -> tanh -----------
    pos_feat = jnp.tanh(mm(pemb_ref[...], wi_ref))            # (B, D)
    neg_feat = jnp.tanh(mm(nemb_ref[...], wi_ref)).reshape(B, Kn, D)

    # ------------------ scores + BCEWithLogits loss -------------------------
    pos_scores = jnp.sum(user * pos_feat, axis=-1, keepdims=True)       # (B, 1)
    neg_scores = jnp.mean(jnp.sum(user[:, None, :] * neg_feat, axis=-1),
                          axis=1, keepdims=True)                        # (B, 1)

    # labels=1 -> softplus(-x); labels=0 -> softplus(x); 'mean' reduction each,
    # then summed — matches the reference two-criterion-call structure.
    loss = jnp.mean(_softplus(-pos_scores)) + jnp.mean(_softplus(neg_scores))
    loss_ref[...] = jnp.reshape(loss, (1, 1))


# ----------------------------------------------------------------------------
# Wrapper (pallas_call plumbing)
# ----------------------------------------------------------------------------
def _full_spec(shape):
    n = len(shape)
    return pl.BlockSpec(shape, lambda: (0,) * n)


def vit_urc_fused_call(patches2d, posenc, pemb, nemb, params, *, B, T, Kn):
    kern = functools.partial(fused_forward_kernel, B=B, T=T, Kn=Kn)
    args = (patches2d, posenc, pemb, nemb,
            params["wp"], params["wq"], params["wk"], params["wv"],
            params["wo"], params["w1"], params["w2"], params["w_item"])
    loss = pl.pallas_call(
        kern,
        out_shape=jax.ShapeDtypeStruct((1, 1), jnp.float32),
        in_specs=[_full_spec(a.shape) for a in args],
        out_specs=pl.BlockSpec((1, 1), lambda: (0, 0)),
    )(*args)
    return loss[0, 0]


# ----------------------------------------------------------------------------
# Glue (layout / gather only — all compute is inside the fused kernel)
# ----------------------------------------------------------------------------
def patchify(matrix, ph, pw):
    B, H, W = matrix.shape
    x = matrix.reshape(B, H // ph, ph, W // pw, pw)
    x = jnp.transpose(x, (0, 1, 3, 2, 4))
    return x.reshape(B, (H // ph) * (W // pw), ph * pw)       # (B, T, P)


def init_params(key, num_items, T, P, D, E):
    ks = jax.random.split(key, 10)

    def w(k, shape, scale=0.1, dtype=jnp.bfloat16):
        return (scale * jax.random.normal(k, shape)).astype(dtype)

    return dict(
        wp=w(ks[0], (P, D)),
        posenc=w(ks[1], (T, D), 0.02, jnp.float32),
        wq=w(ks[2], (D, D)),
        wk=w(ks[3], (D, D)),
        wv=w(ks[4], (D, D)),
        wo=w(ks[5], (D, D)),
        w1=w(ks[6], (D, 4 * D)),
        w2=w(ks[7], (4 * D, D)),
        item_emb=w(ks[8], (num_items, E)),
        w_item=w(ks[9], (E, D)),
    )


@functools.partial(jax.jit, static_argnums=(4, 5))
def vit_urc_forward(params, matrix, pos_items, neg_items, ph, pw):
    B, H, W = matrix.shape
    T = (H // ph) * (W // pw)
    Kn = neg_items.shape[1]
    patches2d = patchify(matrix, ph, pw).reshape(B * T, -1).astype(jnp.bfloat16)
    # item-embedding gather kept as XLA glue (tiny table); fed straight into
    # the single fused kernel.
    pemb = jnp.take(params["item_emb"], pos_items[:, 0], axis=0)          # (B, E)
    nemb = jnp.take(params["item_emb"], neg_items.reshape(-1), axis=0)    # (B*Kn, E)
    return vit_urc_fused_call(patches2d, params["posenc"], pemb, nemb,
                              params, B=B, T=T, Kn=Kn)


# ----------------------------------------------------------------------------
if __name__ == "__main__":
    key = jax.random.PRNGKey(0)
    B, H, W = 2, 16, 16          # W == num_items
    ph = pw = 4
    D = 128                      # hidden dim (lane-dense)
    E = 128                      # item embedding dim (lane-dense)
    T = (H // ph) * (W // pw)    # 16 patch tokens
    P = ph * pw                  # 16 patch pixels

    k1, k2, k3, k4 = jax.random.split(key, 4)
    matrix = (jax.random.uniform(k1, (B, H, W)) < 0.3).astype(jnp.float32)
    pos_items = jax.random.randint(k2, (B, 1), 0, W)                      # K_pos = 1
    neg_items = jax.random.randint(k3, (B, 4), 0, W)                      # K_neg = 4
    params = init_params(k4, W, T, P, D, E)

    loss = vit_urc_forward(params, matrix, pos_items, neg_items, ph, pw)
    loss = jax.block_until_ready(loss)
    assert loss.shape == () and bool(jnp.isfinite(loss))
    print("KERNEL_OK")
</pallas_src>

<mosaic_0001>
module attributes {stable_mosaic.version = 11 : i64} {
  func.func @fused_forward_kernel(%arg0: memref<32x16xbf16, #tpu.memory_space<vmem>>, %arg1: memref<16x128xf32, #tpu.memory_space<vmem>>, %arg2: memref<2x128xbf16, #tpu.memory_space<vmem>>, %arg3: memref<8x128xbf16, #tpu.memory_space<vmem>>, %arg4: memref<16x128xbf16, #tpu.memory_space<vmem>>, %arg5: memref<128x128xbf16, #tpu.memory_space<vmem>>, %arg6: memref<128x128xbf16, #tpu.memory_space<vmem>>, %arg7: memref<128x128xbf16, #tpu.memory_space<vmem>>, %arg8: memref<128x128xbf16, #tpu.memory_space<vmem>>, %arg9: memref<128x512xbf16, #tpu.memory_space<vmem>>, %arg10: memref<512x128xbf16, #tpu.memory_space<vmem>>, %arg11: memref<128x128xbf16, #tpu.memory_space<vmem>>, %arg12: memref<1x1xf32, #tpu.memory_space<vmem>>) attributes {dimension_semantics = [], scalar_prefetch = 0 : i64, scratch_operands = 0 : i64, tpu.core_type = #tpu.core_type<tc>} {
    %c0 = arith.constant 0 : index
    %c0_0 = arith.constant 0 : index
    %0 = vector.load %arg0[%c0, %c0_0] : memref<32x16xbf16, #tpu.memory_space<vmem>>, vector<32x16xbf16>
    %c0_1 = arith.constant 0 : index
    %c0_2 = arith.constant 0 : index
    %1 = vector.load %arg4[%c0_1, %c0_2] : memref<16x128xbf16, #tpu.memory_space<vmem>>, vector<16x128xbf16>
    %cst = arith.constant dense<0.000000e+00> : vector<32x128xf32>
    %2 = tpu.matmul %0, %1, %cst {dimension_numbers = #tpu.dot_dimension_numbers<[1], [0], [0], [1], [0, 0, 1, 1], [], []>} : vector<32x16xbf16>, vector<16x128xbf16>, vector<32x128xf32> -> vector<32x128xf32>
    %3 = vector.shape_cast %2 : vector<32x128xf32> to vector<2x16x128xf32>
    %c0_3 = arith.constant 0 : index
    %c0_4 = arith.constant 0 : index
    %4 = vector.load %arg1[%c0_3, %c0_4] : memref<16x128xf32, #tpu.memory_space<vmem>>, vector<16x128xf32>
    %5 = vector.shape_cast %4 : vector<16x128xf32> to vector<1x16x128xf32>
    %6 = vector.broadcast %5 : vector<1x16x128xf32> to vector<2x16x128xf32>
    %7 = arith.addf %3, %6 : vector<2x16x128xf32>
    %8 = vector.shape_cast %7 : vector<2x16x128xf32> to vector<32x128xf32>
    %9 = arith.truncf %8 : vector<32x128xf32> to vector<32x128xbf16>
    %c0_5 = arith.constant 0 : index
    %c0_6 = arith.constant 0 : index
    %10 = vector.load %arg5[%c0_5, %c0_6] : memref<128x128xbf16, #tpu.memory_space<vmem>>, vector<128x128xbf16>
    %cst_7 = arith.constant dense<0.000000e+00> : vector<32x128xf32>
    %11 = tpu.matmul %9, %10, %cst_7 {dimension_numbers = #tpu.dot_dimension_numbers<[1], [0], [0], [1], [0, 0, 1, 1], [], []>} : vector<32x128xbf16>, vector<128x128xbf16>, vector<32x128xf32> -> vector<32x128xf32>
    %12 = vector.shape_cast %11 : vector<32x128xf32> to vector<2x16x128xf32>
    %13 = arith.truncf %8 : vector<32x128xf32> to vector<32x128xbf16>
    %c0_8 = arith.constant 0 : index
    %c0_9 = arith.constant 0 : index
    %14 = vector.load %arg6[%c0_8, %c0_9] : memref<128x128xbf16, #tpu.memory_space<vmem>>, vector<128x128xbf16>
    %cst_10 = arith.constant dense<0.000000e+00> : vector<32x128xf32>
    %15 = tpu.matmul %13, %14, %cst_10 {dimension_numbers = #tpu.dot_dimension_numbers<[1], [0], [0], [1], [0, 0, 1, 1], [], []>} : vector<32x128xbf16>, vector<128x128xbf16>, vector<32x128xf32> -> vector<32x128xf32>
    %16 = vector.shape_cast %15 : vector<32x128xf32> to vector<2x16x128xf32>
    %17 = arith.truncf %8 : vector<32x128xf32> to vector<32x128xbf16>
    %c0_11 = arith.constant 0 : index
    %c0_12 = arith.constant 0 : index
    %18 = vector.load %arg7[%c0_11, %c0_12] : memref<128x128xbf16, #tpu.memory_space<vmem>>, vector<128x128xbf16>
    %cst_13 = arith.constant dense<0.000000e+00> : vector<32x128xf32>
    %19 = tpu.matmul %17, %18, %cst_13 {dimension_numbers = #tpu.dot_dimension_numbers<[1], [0], [0], [1], [0, 0, 1, 1], [], []>} : vector<32x128xbf16>, vector<128x128xbf16>, vector<32x128xf32> -> vector<32x128xf32>
    %20 = vector.shape_cast %19 : vector<32x128xf32> to vector<2x16x128xf32>
    %21 = arith.truncf %12 : vector<2x16x128xf32> to vector<2x16x128xbf16>
    %22 = arith.truncf %16 : vector<2x16x128xf32> to vector<2x16x128xbf16>
    "tpu.trace_start"() <{level = 10 : i32, message = "btd,bsd->bts"}> : () -> ()
    %cst_14 = arith.constant dense<0.000000e+00> : vector<2x16x16xf32>
    %23 = tpu.matmul %21, %22, %cst_14 {dimension_numbers = #tpu.dot_dimension_numbers<[2], [2], [1], [1], [0, 0, 0, 1, 1, 1], [0], [0]>} : vector<2x16x128xbf16>, vector<2x16x128xbf16>, vector<2x16x16xf32> -> vector<2x16x16xf32>
    "tpu.trace_stop"() : () -> ()
    %cst_15 = arith.constant 0.0883883461 : f32
    %24 = vector.broadcast %cst_15 : f32 to vector<2x16x16xf32>
    %25 = arith.mulf %23, %24 : vector<2x16x16xf32>
    %cst_16 = arith.constant dense<0xFF800000> : vector<2x16xf32>
    %26 = vector.multi_reduction <maximumf>, %25, %cst_16 [2] : vector<2x16x16xf32> to vector<2x16xf32>
    %27 = vector.shape_cast %26 : vector<2x16xf32> to vector<2x16x1xf32>
    %28 = vector.broadcast %27 : vector<2x16x1xf32> to vector<2x16x16xf32>
    %29 = arith.subf %25, %28 : vector<2x16x16xf32>
    %30 = math.exp %29 : vector<2x16x16xf32>
    %cst_17 = arith.constant dense<0.000000e+00> : vector<2x16xf32>
    %31 = vector.multi_reduction <add>, %30, %cst_17 [2] : vector<2x16x16xf32> to vector<2x16xf32>
    %32 = vector.shape_cast %31 : vector<2x16xf32> to vector<2x16x1xf32>
    %33 = tpu.reciprocal %32 {approx = true} : vector<2x16x1xf32> -> vector<2x16x1xf32>
    %34 = vector.broadcast %33 : vector<2x16x1xf32> to vector<2x16x16xf32>
    %35 = arith.mulf %30, %34 : vector<2x16x16xf32>
    %36 = arith.truncf %35 : vector<2x16x16xf32> to vector<2x16x16xbf16>
    %37 = arith.truncf %20 : vector<2x16x128xf32> to vector<2x16x128xbf16>
    "tpu.trace_start"() <{level = 10 : i32, message = "bts,bsd->btd"}> : () -> ()
    %cst_18 = arith.constant dense<0.000000e+00> : vector<2x16x128xf32>
    %38 = tpu.matmul %36, %37, %cst_18 {dimension_numbers = #tpu.dot_dimension_numbers<[2], [1], [1], [2], [0, 0, 0, 1, 1, 2], [0], [0]>} : vector<2x16x16xbf16>, vector<2x16x128xbf16>, vector<2x16x128xf32> -> vector<2x16x128xf32>
    "tpu.trace_stop"() : () -> ()
    %39 = vector.shape_cast %38 : vector<2x16x128xf32> to vector<32x128xf32>
    %40 = arith.truncf %39 : vector<32x128xf32> to vector<32x128xbf16>
    %c0_19 = arith.constant 0 : index
    %c0_20 = arith.constant 0 : index
    %41 = vector.load %arg8[%c0_19, %c0_20] : memref<128x128xbf16, #tpu.memory_space<vmem>>, vector<128x128xbf16>
    %cst_21 = arith.constant dense<0.000000e+00> : vector<32x128xf32>
    %42 = tpu.matmul %40, %41, %cst_21 {dimension_numbers = #tpu.dot_dimension_numbers<[1], [0], [0], [1], [0, 0, 1, 1], [], []>} : vector<32x128xbf16>, vector<128x128xbf16>, vector<32x128xf32> -> vector<32x128xf32>
    %43 = arith.addf %8, %42 : vector<32x128xf32>
    %44 = arith.truncf %43 : vector<32x128xf32> to vector<32x128xbf16>
    %c0_22 = arith.constant 0 : index
    %c0_23 = arith.constant 0 : index
    %45 = vector.load %arg9[%c0_22, %c0_23] : memref<128x512xbf16, #tpu.memory_space<vmem>>, vector<128x512xbf16>
    %cst_24 = arith.constant dense<0.000000e+00> : vector<32x512xf32>
    %46 = tpu.matmul %44, %45, %cst_24 {dimension_numbers = #tpu.dot_dimension_numbers<[1], [0], [0], [1], [0, 0, 1, 1], [], []>} : vector<32x128xbf16>, vector<128x512xbf16>, vector<32x512xf32> -> vector<32x512xf32>
    %cst_25 = arith.constant 5.000000e-01 : f32
    %47 = vector.broadcast %cst_25 : f32 to vector<32x512xf32>
    %48 = arith.mulf %47, %46 : vector<32x512xf32>
    %cst_26 = arith.constant 4.471500e-02 : f32
    %49 = vector.broadcast %cst_26 : f32 to vector<32x512xf32>
    %50 = arith.mulf %49, %46 : vector<32x512xf32>
    %51 = arith.mulf %50, %46 : vector<32x512xf32>
    %52 = arith.mulf %51, %46 : vector<32x512xf32>
    %53 = arith.addf %46, %52 : vector<32x512xf32>
    %cst_27 = arith.constant 0.797884583 : f32
    %54 = vector.broadcast %cst_27 : f32 to vector<32x512xf32>
    %55 = arith.mulf %54, %53 : vector<32x512xf32>
    %56 = math.tanh %55 : vector<32x512xf32>
    %cst_28 = arith.constant 1.000000e+00 : f32
    %57 = vector.broadcast %cst_28 : f32 to vector<32x512xf32>
    %58 = arith.addf %57, %56 : vector<32x512xf32>
    %59 = arith.mulf %48, %58 : vector<32x512xf32>
    %60 = arith.truncf %59 : vector<32x512xf32> to vector<32x512xbf16>
    %c0_29 = arith.constant 0 : index
    %c0_30 = arith.constant 0 : index
    %61 = vector.load %arg10[%c0_29, %c0_30] : memref<512x128xbf16, #tpu.memory_space<vmem>>, vector<512x128xbf16>
    %cst_31 = arith.constant dense<0.000000e+00> : vector<32x128xf32>
    %62 = tpu.matmul %60, %61, %cst_31 {dimension_numbers = #tpu.dot_dimension_numbers<[1], [0], [0], [1], [0, 0, 1, 1], [], []>} : vector<32x512xbf16>, vector<512x128xbf16>, vector<32x128xf32> -> vector<32x128xf32>
    %63 = arith.addf %43, %62 : vector<32x128xf32>
    %64 = vector.shape_cast %63 : vector<32x128xf32> to vector<2x16x128xf32>
    %cst_32 = arith.constant dense<0.000000e+00> : vector<2x128xf32>
    %65 = vector.multi_reduction <add>, %64, %cst_32 [1] : vector<2x16x128xf32> to vector<2x128xf32>
    %cst_33 = arith.constant 1.600000e+01 : f32
    %66 = vector.broadcast %cst_33 : f32 to vector<2x128xf32>
    %67 = arith.divf %65, %66 : vector<2x128xf32>
    %c0_34 = arith.constant 0 : index
    %c0_35 = arith.constant 0 : index
    %68 = vector.load %arg2[%c0_34, %c0_35] : memref<2x128xbf16, #tpu.memory_space<vmem>>, vector<2x128xbf16>
    %c0_36 = arith.constant 0 : index
    %c0_37 = arith.constant 0 : index
    %69 = vector.load %arg11[%c0_36, %c0_37] : memref<128x128xbf16, #tpu.memory_space<vmem>>, vector<128x128xbf16>
    %cst_38 = arith.constant dense<0.000000e+00> : vector<2x128xf32>
    %70 = tpu.matmul %68, %69, %cst_38 {dimension_numbers = #tpu.dot_dimension_numbers<[1], [0], [0], [1], [0, 0, 1, 1], [], []>} : vector<2x128xbf16>, vector<128x128xbf16>, vector<2x128xf32> -> vector<2x128xf32>
    %71 = math.tanh %70 : vector<2x128xf32>
    %c0_39 = arith.constant 0 : index
    %c0_40 = arith.constant 0 : index
    %72 = vector.load %arg3[%c0_39, %c0_40] : memref<8x128xbf16, #tpu.memory_space<vmem>>, vector<8x128xbf16>
    %c0_41 = arith.constant 0 : index
    %c0_42 = arith.constant 0 : index
    %73 = vector.load %arg11[%c0_41, %c0_42] : memref<128x128xbf16, #tpu.memory_space<vmem>>, vector<128x128xbf16>
    %cst_43 = arith.constant dense<0.000000e+00> : vector<8x128xf32>
    %74 = tpu.matmul %72, %73, %cst_43 {dimension_numbers = #tpu.dot_dimension_numbers<[1], [0], [0], [1], [0, 0, 1, 1], [], []>} : vector<8x128xbf16>, vector<128x128xbf16>, vector<8x128xf32> -> vector<8x128xf32>
    %75 = math.tanh %74 : vector<8x128xf32>
    %76 = vector.shape_cast %75 : vector<8x128xf32> to vector<2x4x128xf32>
    %77 = arith.mulf %67, %71 : vector<2x128xf32>
    %cst_44 = arith.constant dense<0.000000e+00> : vector<2xf32>
    %78 = vector.multi_reduction <add>, %77, %cst_44 [1] : vector<2x128xf32> to vector<2xf32>
    %79 = vector.shape_cast %78 : vector<2xf32> to vector<2x1xf32>
    %80 = vector.shape_cast %67 : vector<2x128xf32> to vector<2x1x128xf32>
    %81 = vector.broadcast %80 : vector<2x1x128xf32> to vector<2x4x128xf32>
    %82 = arith.mulf %81, %76 : vector<2x4x128xf32>
    %cst_45 = arith.constant dense<0.000000e+00> : vector<2x4xf32>
    %83 = vector.multi_reduction <add>, %82, %cst_45 [2] : vector<2x4x128xf32> to vector<2x4xf32>
    %cst_46 = arith.constant dense<0.000000e+00> : vector<2xf32>
    %84 = vector.multi_reduction <add>, %83, %cst_46 [1] : vector<2x4xf32> to vector<2xf32>
    %85 = vector.shape_cast %84 : vector<2xf32> to vector<2x1xf32>
    %cst_47 = arith.constant 4.000000e+00 : f32
    %86 = vector.broadcast %cst_47 : f32 to vector<2x1xf32>
    %87 = arith.divf %85, %86 : vector<2x1xf32>
    %cst_48 = arith.constant 0.000000e+00 : f32
    %88 = vector.broadcast %cst_48 : f32 to vector<2x1xf32>
    %89 = arith.subf %88, %79 : vector<2x1xf32>
    %cst_49 = arith.constant 0.000000e+00 : f32
    %90 = vector.broadcast %cst_49 : f32 to vector<2x1xf32>
    %91 = arith.maximumf %89, %90 : vector<2x1xf32>
    %92 = math.absf %89 : vector<2x1xf32>
    %cst_50 = arith.constant 0.000000e+00 : f32
    %93 = vector.broadcast %cst_50 : f32 to vector<2x1xf32>
    %94 = arith.subf %93, %92 : vector<2x1xf32>
    %95 = math.exp %94 : vector<2x1xf32>
    %96 = math.log1p %95 : vector<2x1xf32>
    %97 = arith.addf %91, %96 : vector<2x1xf32>
    %98 = vector.shape_cast %97 : vector<2x1xf32> to vector<1x2x1xf32>
    %cst_51 = arith.constant dense<0.000000e+00> : vector<1xf32>
    %99 = vector.multi_reduction <add>, %98, %cst_51 [1, 2] : vector<1x2x1xf32> to vector<1xf32>
    %100 = vector.shape_cast %99 : vector<1xf32> to vector<1x1x1xf32>
    %101 = vector.extract %100[0, 0, 0] : f32 from vector<1x1x1xf32>
    %cst_52 = arith.constant 2.000000e+00 : f32
    %102 = arith.divf %101, %cst_52 : f32
    %cst_53 = arith.constant 0.000000e+00 : f32
    %103 = vector.broadcast %cst_53 : f32 to vector<2x1xf32>
    %104 = arith.maximumf %87, %103 : vector<2x1xf32>
    %105 = math.absf %87 : vector<2x1xf32>
    %cst_54 = arith.constant 0.000000e+00 : f32
    %106 = vector.broadcast %cst_54 : f32 to vector<2x1xf32>
    %107 = arith.subf %106, %105 : vector<2x1xf32>
    %108 = math.exp %107 : vector<2x1xf32>
    %109 = math.log1p %108 : vector<2x1xf32>
    %110 = arith.addf %104, %109 : vector<2x1xf32>
    %111 = vector.shape_cast %110 : vector<2x1xf32> to vector<1x2x1xf32>
    %cst_55 = arith.constant dense<0.000000e+00> : vector<1xf32>
    %112 = vector.multi_reduction <add>, %111, %cst_55 [1, 2] : vector<1x2x1xf32> to vector<1xf32>
    %113 = vector.shape_cast %112 : vector<1xf32> to vector<1x1x1xf32>
    %114 = vector.extract %113[0, 0, 0] : f32 from vector<1x1x1xf32>
    %cst_56 = arith.constant 2.000000e+00 : f32
    %115 = arith.divf %114, %cst_56 : f32
    %116 = arith.addf %102, %115 : f32
    %117 = vector.broadcast %116 : f32 to vector<1x1xf32>
    %c0_57 = arith.constant 0 : index
    %c0_58 = arith.constant 0 : index
    %118 = vector.load %arg12[%c0_57, %c0_58] : memref<1x1xf32, #tpu.memory_space<vmem>>, vector<1x1xf32>
    tpu.vector_store %arg12[%c0_57, %c0_58], %117 {strides = array<i32>} : memref<1x1xf32, #tpu.memory_space<vmem>>, vector<1x1xf32>,
    return
  }
}

</mosaic_0001>

<llo_original>
// kernel: vit_urc_forward.1
$region0: #{vit_urc_forward.1}
  #allocation0 [shape = 'u32[]', space=smem, size = 0x4, offset = 0x4, fixed_abs, tag = 'smem constant byte address 0x4 - core index']
  #allocation1 [shape = 'u32[144,128]{1,0:T(1,128)}', space=vmem, size = 0x12000, scoped, tag = 'internal scratch']
  %s0 = inlined_call_operand.vmem [shape: bf16[32,16], index: 0, kind: input, shape index: {}]
  %s1 = inlined_call_operand.vmem [shape: f32[16,128], index: 1, kind: input, shape index: {}]
  %s2 = inlined_call_operand.vmem [shape: bf16[2,128], index: 2, kind: input, shape index: {}]
  %s3 = inlined_call_operand.vmem [shape: bf16[8,128], index: 3, kind: input, shape index: {}]
  %s4 = inlined_call_operand.hbm [shape: bf16[16,128], index: 4, kind: input, shape index: {}]
  %s5 = inlined_call_operand.vmem [shape: bf16[128,128], index: 5, kind: input, shape index: {}]
  %s6 = inlined_call_operand.vmem [shape: bf16[128,128], index: 6, kind: input, shape index: {}]
  %s7 = inlined_call_operand.vmem [shape: bf16[128,128], index: 7, kind: input, shape index: {}]
  %s8 = inlined_call_operand.hbm [shape: bf16[128,128], index: 8, kind: input, shape index: {}]
  %s9 = inlined_call_operand.vmem [shape: bf16[128,512], index: 9, kind: input, shape index: {}]
  %s10 = inlined_call_operand.hbm [shape: bf16[512,128], index: 10, kind: input, shape index: {}]
  %s11 = inlined_call_operand.hbm [shape: bf16[128,128], index: 11, kind: input, shape index: {}]
  %s12 = inlined_call_operand.hbm [shape: f32[1,1], index: 12, kind: output, shape index: {}]
  %s13 = sld [smem:[#allocation0]]
  $region74: #{vit_urc_forward.1} parent=0
    _
  %s15 = ssub.s32 1, %s13
  %s16 = scalar_select 0, %s15, %s13
  $region1: #{vit_urc_forward.1} parent=0
    #allocation2 [shape = 'u8[4096]{0}', space=vmem, size = 0x1000, scoped, tag = 'input window, operand 4, single buffered']
    #allocation3 [shape = 's32[1]{0}', space=sflag, size = 0x4, scoped, tag = 'scoped memory for vit_urc_forward.1']
    #allocation4 [shape = 's32[1]{0}', space=sflag, size = 0x4, scoped, tag = 'scoped memory for vit_urc_forward.1']
    #allocation5 [shape = 'u8[32768]{0}', space=vmem, size = 0x8000, scoped, tag = 'input window, operand 8, single buffered']
    #allocation6 [shape = 's32[1]{0}', space=sflag, size = 0x4, scoped, tag = 'scoped memory for vit_urc_forward.1']
    #allocation7 [shape = 'u8[131072]{0}', space=vmem, size = 0x20000, scoped, tag = 'input window, operand 10, single buffered']
    #allocation8 [shape = 'u8[32768]{0}', space=vmem, size = 0x8000, scoped, tag = 'input window, operand 11, single buffered']
    #allocation9 [shape = 's32[1]{0}', space=sflag, size = 0x4, scoped, tag = 'scoped memory for vit_urc_forward.1']
    #allocation10 [shape = 'u8[512]{0}', space=vmem, size = 0x400, scoped, tag = 'output window, operand 0, single buffered']
    %17 = vsyncpa [#allocation3], 0
    %18 = vsyncpa [#allocation6], 0
    %19 = vsyncpa [#allocation9], 0
    %20 = vsyncpa [#allocation4], 0
    // Predicated region
    $region2: #{vit_urc_forward.1} parent=1 // pred_check
      _
    $region3: #{vit_urc_forward.1} parent=1 // pred_check_branch
      %22 = sbr.rel (0) target = $region5
    $region4: #{vit_urc_forward.1} parent=1 // pred_region
      _
    $region5: #{vit_urc_forward.1} parent=1 // pred_fallthru
      _
    // Predicated region
    $region6: #{vit_urc_forward.1} parent=1 // pred_check
      _
    $region7: #{vit_urc_forward.1} parent=1 // pred_check_branch
      %24 = sbr.rel (0) target = $region9
    $region8: #{vit_urc_forward.1} parent=1 // pred_region
      _
    $region9: #{vit_urc_forward.1} parent=1 // pred_fallthru
      _
    // Predicated region
    $region10: #{vit_urc_forward.1} parent=1 // pred_check
      _
    $region11: #{vit_urc_forward.1} parent=1 // pred_check_branch
      %26 = sbr.rel (0) target = $region13
    $region12: #{vit_urc_forward.1} parent=1 // pred_region
      _
    $region13: #{vit_urc_forward.1} parent=1 // pred_fallthru
      _
    // Predicated region
    $region14: #{vit_urc_forward.1} parent=1 // pred_check
      _
    $region15: #{vit_urc_forward.1} parent=1 // pred_check_branch
      %28 = sbr.rel (0) target = $region17
    $region16: #{vit_urc_forward.1} parent=1 // pred_region
      _
    $region17: #{vit_urc_forward.1} parent=1 // pred_fallthru
      _
    // Predicated region
    $region18: #{vit_urc_forward.1} parent=1 // pred_check
      _
    $region19: #{vit_urc_forward.1} parent=1 // pred_check_branch
      %30 = sbr.rel (0) target = $region21
    $region20: #{vit_urc_forward.1} parent=1 // pred_region
      %s32 = ssub.s32 128, 128
      %33 = vsyncadd [#allocation3], %s32
      %s34 = sshll.u32 [#allocation2], 4
      %s35 = int_to_ptr.vmem [resolvable:$true] %s34
      %40 = dma.hbm_to_vmem [thread:$0]  %s4, 128, %s35, [#allocation3], 64, 64, 4
    $region21: #{vit_urc_forward.1} parent=1 // pred_fallthru
      _
    // Predicated region
    $region22: #{vit_urc_forward.1} parent=1 // pred_check
      _
    $region23: #{vit_urc_forward.1} parent=1 // pred_check_branch
      %42 = sbr.rel (0) target = $region25
    $region24: #{vit_urc_forward.1} parent=1 // pred_region
      _
    $region25: #{vit_urc_forward.1} parent=1 // pred_fallthru
      _
    // Predicated region
    $region26: #{vit_urc_forward.1} parent=1 // pred_check
      _
    $region27: #{vit_urc_forward.1} parent=1 // pred_check_branch
      %44 = sbr.rel (0) target = $region29
    $region28: #{vit_urc_forward.1} parent=1 // pred_region
      _
    $region29: #{vit_urc_forward.1} parent=1 // pred_fallthru
      _
    // Predicated region
    $region30: #{vit_urc_forward.1} parent=1 // pred_check
      _
    $region31: #{vit_urc_forward.1} parent=1 // pred_check_branch
      %46 = sbr.rel (0) target = $region33
    $region32: #{vit_urc_forward.1} parent=1 // pred_region
      _
    $region33: #{vit_urc_forward.1} parent=1 // pred_fallthru
      _
    // Predicated region
    $region34: #{vit_urc_forward.1} parent=1 // pred_check
      _
    $region35: #{vit_urc_forward.1} parent=1 // pred_check_branch
      %48 = sbr.rel (0) target = $region37
    $region36: #{vit_urc_forward.1} parent=1 // pred_region
      %s50 = ssub.s32 1024, 1024
      %51 = vsyncadd [#allocation6], %s50
      %s52 = sshll.u32 [#allocation5], 4
      %s53 = int_to_ptr.vmem [resolvable:$true] %s52
      %58 = dma.hbm_to_vmem [thread:$0]  %s8, 1024, %s53, [#allocation6], 64, 64, 4
    $region37: #{vit_urc_forward.1} parent=1 // pred_fallthru
      _
    // Predicated region
    $region38: #{vit_urc_forward.1} parent=1 // pred_check
      _
    $region39: #{vit_urc_forward.1} parent=1 // pred_check_branch
      %60 = sbr.rel (0) target = $region41
    $region40: #{vit_urc_forward.1} parent=1 // pred_region
      _
    $region41: #{vit_urc_forward.1} parent=1 // pred_fallthru
      _
    // Predicated region
    $region42: #{vit_urc_forward.1} parent=1 // pred_check
      _
    $region43: #{vit_urc_forward.1} parent=1 // pred_check_branch
      %62 = sbr.rel (0) target = $region45
    $region44: #{vit_urc_forward.1} parent=1 // pred_region
      %s64 = ssub.s32 4096, 4096
      %65 = vsyncadd [#allocation6], %s64
      %s66 = sshll.u32 [#allocation7], 4
      %s67 = int_to_ptr.vmem [resolvable:$true] %s66
      %72 = dma.hbm_to_vmem [thread:$0]  %s10, 4096, %s67, [#allocation6], 64, 64, 4
    $region45: #{vit_urc_forward.1} parent=1 // pred_fallthru
      _
    // Predicated region
    $region46: #{vit_urc_forward.1} parent=1 // pred_check
      _
    $region47: #{vit_urc_forward.1} parent=1 // pred_check_branch
      %74 = sbr.rel (0) target = $region49
    $region48: #{vit_urc_forward.1} parent=1 // pred_region
      %s76 = ssub.s32 1024, 1024
      %77 = vsyncadd [#allocation9], %s76
      %s78 = sshll.u32 [#allocation8], 4
      %s79 = int_to_ptr.vmem [resolvable:$true] %s78
      %84 = dma.hbm_to_vmem [thread:$0]  %s11, 1024, %s79, [#allocation9], 64, 64, 4
    $region49: #{vit_urc_forward.1} parent=1 // pred_fallthru
      _
    // Predicated region
    $region50: #{vit_urc_forward.1} parent=1 // pred_check
      _
    $region51: #{vit_urc_forward.1} parent=1 // pred_check_branch
      %86 = sbr.rel (0) target = $region53
    $region52: #{vit_urc_forward.1} parent=1 // pred_region
      %87 = dma.done [#allocation3], 128
    $region53: #{vit_urc_forward.1} parent=1 // pred_fallthru
      _
    // Predicated region
    $region54: #{vit_urc_forward.1} parent=1 // pred_check
      _
    $region55: #{vit_urc_forward.1} parent=1 // pred_check_branch
      %89 = sbr.rel (0) target = $region57
    $region56: #{vit_urc_forward.1} parent=1 // pred_region
      %90 = dma.done [#allocation6], 1024
    $region57: #{vit_urc_forward.1} parent=1 // pred_fallthru
      _
    // Predicated region
    $region58: #{vit_urc_forward.1} parent=1 // pred_check
      _
    $region59: #{vit_urc_forward.1} parent=1 // pred_check_branch
      %92 = sbr.rel (0) target = $region61
    $region60: #{vit_urc_forward.1} parent=1 // pred_region
      %93 = dma.done [#allocation6], 4096
    $region61: #{vit_urc_forward.1} parent=1 // pred_fallthru
      _
    // Predicated region
    $region62: #{vit_urc_forward.1} parent=1 // pred_check
      _
    $region63: #{vit_urc_forward.1} parent=1 // pred_check_branch
      %95 = sbr.rel (0) target = $region65
    $region64: #{vit_urc_forward.1} parent=1 // pred_region
      %96 = dma.done [#allocation9], 1024
    $region65: #{vit_urc_forward.1} parent=1 // pred_fallthru
      _
    %v98 = vld [vmem:[%s0] sm:$0xf]
    %v99 = vld [vmem:[%s0 + $0x4] sm:$0xf]
    %v100 = vld [vmem:[%s0 + $0x8] sm:$0xf]
    %v101 = vld [vmem:[%s0 + $0xc] sm:$0xf]
    %v102 = vld [vmem:[#allocation2] sm:$0xf]
    %v103 = vld [vmem:[#allocation2 + $0x4] sm:$0xf]
    %v108 = vunpack.c.l.b16 %v98
    %v109 = vunpack.c.l.b16 %v99
    %v110 = vunpack.c.l.b16 %v100
    %v111 = vunpack.c.l.b16 %v101
    %v112 = vpack.c.b16 %v109, %v108
    %v113 = vpack.c.b16 %v111, %v110
    %v116 = vunpack.c.l.b16 %v102
    %v117 = vunpack.c.l.b16 %v103
    %v118 = vpack.c.b16 %v117, %v116
    %vm120 = vcmask 130048
    %v122 = vsel %vm120, %v112, 0
    %v125 = vsel %vm120, %v113, 0
    %127 = vmatprep.subr.bf16.mxu0 0
    %128 = vmatpush1.bf16.msra.mxu0 %v118
    %129 = vmatprep.subr.bf16.mxu0 0
    %130 = vmatpush1.bf16.msra.mxu0 0
    %131 = vmatprep.subr.bf16.mxu0 0
    %132 = vmatpush1.bf16.msra.mxu0 0
    %133 = vmatprep.subr.bf16.mxu0 0
    %134 = vmatpush1.bf16.msra.mxu0 0
    %135 = vmatprep.subr.bf16.mxu0 0
    %136 = vmatpush1.bf16.msra.mxu0 0
    %137 = vmatprep.subr.bf16.mxu0 0
    %138 = vmatpush1.bf16.msra.mxu0 0
    %139 = vmatprep.subr.bf16.mxu0 0
    %140 = vmatpush1.bf16.msra.mxu0 0
    %141 = vmatprep.subr.bf16.mxu0 0
    %142 = vmatpush1.bf16.msra.mxu0 0
    %143 = vmatprep.subr.bf16.mxu0 0
    %144 = vmatpush1.bf16.msra.mxu0 0
    %145 = vmatprep.subr.bf16.mxu0 0
    %146 = vmatpush1.bf16.msra.mxu0 0
    %147 = vmatprep.subr.bf16.mxu0 0
    %148 = vmatpush1.bf16.msra.mxu0 0
    %149 = vmatprep.subr.bf16.mxu0 0
    %150 = vmatpush1.bf16.msra.mxu0 0
    %151 = vmatprep.subr.bf16.mxu0 0
    %152 = vmatpush1.bf16.msra.mxu0 0
    %153 = vmatprep.subr.bf16.mxu0 0
    %154 = vmatpush1.bf16.msra.mxu0 0
    %155 = vmatprep.subr.bf16.mxu0 0
    %156 = vmatpush1.bf16.msra.mxu0 0
    %157 = vmatprep.subr.bf16.mxu0 0
    %158 = vmatpush1.bf16.msra.mxu0 0
    %159 = vmatprep.mubr.bf16.mxu0 0
    %160 = vmatmul.mubr.bf16.gmra.mrb[0].mxu0 %v122
    %v161 = vpop.f32.mrb[0].mxu0
    %v162 = vadd.f32 0.0, %v161
    %v163 = vpop.f32.mrb[0].mxu0
    %v164 = vpop.f32.mrb[0].mxu0
    %v165 = vadd.f32 0.0, %v164
    %v166 = vpop.f32.mrb[0].mxu0
    %167 = vmatprep.mubr.bf16.mxu0 0
    %168 = vmatmul.mubr.bf16.gmra.mrb[0].mxu0 %v125
    %v169 = vpop.f32.mrb[0].mxu0
    %v170 = vadd.f32 0.0, %v169
    %v171 = vpop.f32.mrb[0].mxu0
    %v172 = vpop.f32.mrb[0].mxu0
    %v173 = vadd.f32 0.0, %v172
    %v174 = vpop.f32.mrb[0].mxu0
    %175 = vdwg.mxu0
    %v176 = vld [vmem:[%s1] sm:$0xff]
    %v177 = vld [vmem:[%s1 + $0x8] sm:$0xff]
    %v178 = vadd.f32 %v162, %v176
    %v179 = vadd.f32 %v165, %v177
    %v180 = vadd.f32 %v170, %v176
    %v181 = vadd.f32 %v173, %v177
    %v182 = vpack.c.bf16 %v179, %v178
    %v183 = vpack.c.bf16 %v181, %v180
    %v184 = vld [vmem:[%s5] sm:$0xf]
    %v185 = vld [vmem:[%s5 + $0x4] sm:$0xf]
    %v186 = vld [vmem:[%s5 + $0x8] sm:$0xf]
    %v187 = vld [vmem:[%s5 + $0xc] sm:$0xf]
    %v188 = vld [vmem:[%s5 + $0x10] sm:$0xf]
    %v189 = vld [vmem:[%s5 + $0x14] sm:$0xf]
    %v190 = vld [vmem:[%s5 + $0x18] sm:$0xf]
    %v191 = vld [vmem:[%s5 + $0x1c] sm:$0xf]
    %v192 = vld [vmem:[%s5 + $0x20] sm:$0xf]
    %v193 = vld [vmem:[%s5 + $0x24] sm:$0xf]
    %v194 = vld [vmem:[%s5 + $0x28] sm:$0xf]
    %v195 = vld [vmem:[%s5 + $0x2c] sm:$0xf]
    %v196 = vld [vmem:[%s5 + $0x30] sm:$0xf]
    %v197 = vld [vmem:[%s5 + $0x34] sm:$0xf]
    %v198 = vld [vmem:[%s5 + $0x38] sm:$0xf]
    %v199 = vld [vmem:[%s5 + $0x3c] sm:$0xf]
    %v216 = vunpack.c.l.b16 %v184
    %v217 = vunpack.c.l.b16 %v185
    %v218 = vunpack.c.l.b16 %v186
    %v219 = vunpack.c.l.b16 %v187
    %v220 = vunpack.c.l.b16 %v188
    %v221 = vunpack.c.l.b16 %v189
    %v222 = vunpack.c.l.b16 %v190
    %v223 = vunpack.c.l.b16 %v191
    %v224 = vunpack.c.l.b16 %v192
    %v225 = vunpack.c.l.b16 %v193
    %v226 = vunpack.c.l.b16 %v194
    %v227 = vunpack.c.l.b16 %v195
    %v228 = vunpack.c.l.b16 %v196
    %v229 = vunpack.c.l.b16 %v197
    %v230 = vunpack.c.l.b16 %v198
    %v231 = vunpack.c.l.b16 %v199
    %v232 = vpack.c.b16 %v217, %v216
    %v233 = vpack.c.b16 %v219, %v218
    %v234 = vpack.c.b16 %v221, %v220
    %v235 = vpack.c.b16 %v223, %v222
    %v236 = vpack.c.b16 %v225, %v224
    %v237 = vpack.c.b16 %v227, %v226
    %v238 = vpack.c.b16 %v229, %v228
    %v239 = vpack.c.b16 %v231, %v230
    %248 = vmatprep.subr.bf16.mxu0 0
    %249 = vmatpush1.bf16.msra.mxu0 %v232
    %250 = vmatprep.subr.bf16.mxu0 0
    %251 = vmatpush1.bf16.msra.mxu0 %v233
    %252 = vmatprep.subr.bf16.mxu0 0
    %253 = vmatpush1.bf16.msra.mxu0 %v234
    %254 = vmatprep.subr.bf16.mxu0 0
    %255 = vmatpush1.bf16.msra.mxu0 %v235
    %256 = vmatprep.subr.bf16.mxu0 0
    %257 = vmatpush1.bf16.msra.mxu0 %v236
    %258 = vmatprep.subr.bf16.mxu0 0
    %259 = vmatpush1.bf16.msra.mxu0 %v237
    %260 = vmatprep.subr.bf16.mxu0 0
    %261 = vmatpush1.bf16.msra.mxu0 %v238
    %262 = vmatprep.subr.bf16.mxu0 0
    %263 = vmatpush1.bf16.msra.mxu0 %v239
    %264 = vmatprep.subr.bf16.mxu0 0
    %265 = vmatpush1.bf16.msra.mxu0 0
    %266 = vmatprep.subr.bf16.mxu0 0
    %267 = vmatpush1.bf16.msra.mxu0 0
    %268 = vmatprep.subr.bf16.mxu0 0
    %269 = vmatpush1.bf16.msra.mxu0 0
    %270 = vmatprep.subr.bf16.mxu0 0
    %271 = vmatpush1.bf16.msra.mxu0 0
    %272 = vmatprep.subr.bf16.mxu0 0
    %273 = vmatpush1.bf16.msra.mxu0 0
    %274 = vmatprep.subr.bf16.mxu0 0
    %275 = vmatpush1.bf16.msra.mxu0 0
    %276 = vmatprep.subr.bf16.mxu0 0
    %277 = vmatpush1.bf16.msra.mxu0 0
    %278 = vmatprep.subr.bf16.mxu0 0
    %279 = vmatpush1.bf16.msra.mxu0 0
    %280 = vmatprep.mubr.bf16.mxu0 0
    %281 = vmatmul.mubr.bf16.gmra.mrb[0].mxu0 %v182
    %v282 = vpop.f32.mrb[0].mxu0
    %v283 = vadd.f32 0.0, %v282
    %v284 = vpop.f32.mrb[0].mxu0
    %v285 = vpop.f32.mrb[0].mxu0
    %v286 = vadd.f32 0.0, %v285
    %v287 = vpop.f32.mrb[0].mxu0
    %288 = vmatprep.mubr.bf16.mxu0 0
    %289 = vmatmul.mubr.bf16.gmra.mrb[0].mxu0 %v183
    %v290 = vpop.f32.mrb[0].mxu0
    %v291 = vadd.f32 0.0, %v290
    %v292 = vpop.f32.mrb[0].mxu0
    %v293 = vpop.f32.mrb[0].mxu0
    %v294 = vadd.f32 0.0, %v293
    %v295 = vpop.f32.mrb[0].mxu0
    %296 = vdwg.mxu0
    %v297 = vld [vmem:[%s6] sm:$0xf]
    %v298 = vld [vmem:[%s6 + $0x4] sm:$0xf]
    %v299 = vld [vmem:[%s6 + $0x8] sm:$0xf]
    %v300 = vld [vmem:[%s6 + $0xc] sm:$0xf]
    %v301 = vld [vmem:[%s6 + $0x10] sm:$0xf]
    %v302 = vld [vmem:[%s6 + $0x14] sm:$0xf]
    %v303 = vld [vmem:[%s6 + $0x18] sm:$0xf]
    %v304 = vld [vmem:[%s6 + $0x1c] sm:$0xf]
    %v305 = vld [vmem:[%s6 + $0x20] sm:$0xf]
    %v306 = vld [vmem:[%s6 + $0x24] sm:$0xf]
    %v307 = vld [vmem:[%s6 + $0x28] sm:$0xf]
    %v308 = vld [vmem:[%s6 + $0x2c] sm:$0xf]
    %v309 = vld [vmem:[%s6 + $0x30] sm:$0xf]
    %v310 = vld [vmem:[%s6 + $0x34] sm:$0xf]
    %v311 = vld [vmem:[%s6 + $0x38] sm:$0xf]
    %v312 = vld [vmem:[%s6 + $0x3c] sm:$0xf]
    %v329 = vunpack.c.l.b16 %v297
    %v330 = vunpack.c.l.b16 %v298
    %v331 = vunpack.c.l.b16 %v299
    %v332 = vunpack.c.l.b16 %v300
    %v333 = vunpack.c.l.b16 %v301
    %v334 = vunpack.c.l.b16 %v302
    %v335 = vunpack.c.l.b16 %v303
    %v336 = vunpack.c.l.b16 %v304
    %v337 = vunpack.c.l.b16 %v305
    %v338 = vunpack.c.l.b16 %v306
    %v339 = vunpack.c.l.b16 %v307
    %v340 = vunpack.c.l.b16 %v308
    %v341 = vunpack.c.l.b16 %v309
    %v342 = vunpack.c.l.b16 %v310
    %v343 = vunpack.c.l.b16 %v311
    %v344 = vunpack.c.l.b16 %v312
    %v345 = vpack.c.b16 %v330, %v329
    %v346 = vpack.c.b16 %v332, %v331
    %v347 = vpack.c.b16 %v334, %v333
    %v348 = vpack.c.b16 %v336, %v335
    %v349 = vpack.c.b16 %v338, %v337
    %v350 = vpack.c.b16 %v340, %v339
    %v351 = vpack.c.b16 %v342, %v341
    %v352 = vpack.c.b16 %v344, %v343
    %361 = vmatprep.subr.bf16.mxu0 0
    %362 = vmatpush1.bf16.msra.mxu0 %v345
    %363 = vmatprep.subr.bf16.mxu0 0
    %364 = vmatpush1.bf16.msra.mxu0 %v346
    %365 = vmatprep.subr.bf16.mxu0 0
    %366 = vmatpush1.bf16.msra.mxu0 %v347
    %367 = vmatprep.subr.bf16.mxu0 0
    %368 = vmatpush1.bf16.msra.mxu0 %v348
    %369 = vmatprep.subr.bf16.mxu0 0
    %370 = vmatpush1.bf16.msra.mxu0 %v349
    %371 = vmatprep.subr.bf16.mxu0 0
    %372 = vmatpush1.bf16.msra.mxu0 %v350
    %373 = vmatprep.subr.bf16.mxu0 0
    %374 = vmatpush1.bf16.msra.mxu0 %v351
    %375 = vmatprep.subr.bf16.mxu0 0
    %376 = vmatpush1.bf16.msra.mxu0 %v352
    %377 = vmatprep.subr.bf16.mxu0 0
    %378 = vmatpush1.bf16.msra.mxu0 0
    %379 = vmatprep.subr.bf16.mxu0 0
    %380 = vmatpush1.bf16.msra.mxu0 0
    %381 = vmatprep.subr.bf16.mxu0 0
    %382 = vmatpush1.bf16.msra.mxu0 0
    %383 = vmatprep.subr.bf16.mxu0 0
    %384 = vmatpush1.bf16.msra.mxu0 0
    %385 = vmatprep.subr.bf16.mxu0 0
    %386 = vmatpush1.bf16.msra.mxu0 0
    %387 = vmatprep.subr.bf16.mxu0 0
    %388 = vmatpush1.bf16.msra.mxu0 0
    %389 = vmatprep.subr.bf16.mxu0 0
    %390 = vmatpush1.bf16.msra.mxu0 0
    %391 = vmatprep.subr.bf16.mxu0 0
    %392 = vmatpush1.bf16.msra.mxu0 0
    %393 = vmatprep.mubr.bf16.mxu0 0
    %394 = vmatmul.mubr.bf16.gmra.mrb[0].mxu0 %v182
    %v395 = vpop.f32.mrb[0].mxu0
    %v396 = vadd.f32 0.0, %v395
    %v397 = vpop.f32.mrb[0].mxu0
    %v398 = vpop.f32.mrb[0].mxu0
    %v399 = vadd.f32 0.0, %v398
    %v400 = vpop.f32.mrb[0].mxu0
    %401 = vmatprep.mubr.bf16.mxu0 0
    %402 = vmatmul.mubr.bf16.gmra.mrb[0].mxu0 %v183
    %v403 = vpop.f32.mrb[0].mxu0
    %v404 = vadd.f32 0.0, %v403
    %v405 = vpop.f32.mrb[0].mxu0
    %v406 = vpop.f32.mrb[0].mxu0
    %v407 = vadd.f32 0.0, %v406
    %v408 = vpop.f32.mrb[0].mxu0
    %409 = vdwg.mxu0
    %v410 = vld [vmem:[%s7] sm:$0xf]
    %v411 = vld [vmem:[%s7 + $0x4] sm:$0xf]
    %v412 = vld [vmem:[%s7 + $0x8] sm:$0xf]
    %v413 = vld [vmem:[%s7 + $0xc] sm:$0xf]
    %v414 = vld [vmem:[%s7 + $0x10] sm:$0xf]
    %v415 = vld [vmem:[%s7 + $0x14] sm:$0xf]
    %v416 = vld [vmem:[%s7 + $0x18] sm:$0xf]
    %v417 = vld [vmem:[%s7 + $0x1c] sm:$0xf]
    %v418 = vld [vmem:[%s7 + $0x20] sm:$0xf]
    %v419 = vld [vmem:[%s7 + $0x24] sm:$0xf]
    %v420 = vld [vmem:[%s7 + $0x28] sm:$0xf]
    %v421 = vld [vmem:[%s7 + $0x2c] sm:$0xf]
    %v422 = vld [vmem:[%s7 + $0x30] sm:$0xf]
    %v423 = vld [vmem:[%s7 + $0x34] sm:$0xf]
    %v424 = vld [vmem:[%s7 + $0x38] sm:$0xf]
    %v425 = vld [vmem:[%s7 + $0x3c] sm:$0xf]
    %v442 = vunpack.c.l.b16 %v410
    %v443 = vunpack.c.l.b16 %v411
    %v444 = vunpack.c.l.b16 %v412
    %v445 = vunpack.c.l.b16 %v413
    %v446 = vunpack.c.l.b16 %v414
    %v447 = vunpack.c.l.b16 %v415
    %v448 = vunpack.c.l.b16 %v416
    %v449 = vunpack.c.l.b16 %v417
    %v450 = vunpack.c.l.b16 %v418
    %v451 = vunpack.c.l.b16 %v419
    %v452 = vunpack.c.l.b16 %v420
    %v453 = vunpack.c.l.b16 %v421
    %v454 = vunpack.c.l.b16 %v422
    %v455 = vunpack.c.l.b16 %v423
    %v456 = vunpack.c.l.b16 %v424
    %v457 = vunpack.c.l.b16 %v425
    %v458 = vpack.c.b16 %v443, %v442
    %v459 = vpack.c.b16 %v445, %v444
    %v460 = vpack.c.b16 %v447, %v446
    %v461 = vpack.c.b16 %v449, %v448
    %v462 = vpack.c.b16 %v451, %v450
    %v463 = vpack.c.b16 %v453, %v452
    %v464 = vpack.c.b16 %v455, %v454
    %v465 = vpack.c.b16 %v457, %v456
    %474 = vmatprep.subr.bf16.mxu0 0
    %475 = vmatpush1.bf16.msra.mxu0 %v458
    %476 = vmatprep.subr.bf16.mxu0 0
    %477 = vmatpush1.bf16.msra.mxu0 %v459
    %478 = vmatprep.subr.bf16.mxu0 0
    %479 = vmatpush1.bf16.msra.mxu0 %v460
    %480 = vmatprep.subr.bf16.mxu0 0
    %481 = vmatpush1.bf16.msra.mxu0 %v461
    %482 = vmatprep.subr.bf16.mxu0 0
    %483 = vmatpush1.bf16.msra.mxu0 %v462
    %484 = vmatprep.subr.bf16.mxu0 0
    %485 = vmatpush1.bf16.msra.mxu0 %v463
    %486 = vmatprep.subr.bf16.mxu0 0
    %487 = vmatpush1.bf16.msra.mxu0 %v464
    %488 = vmatprep.subr.bf16.mxu0 0
    %489 = vmatpush1.bf16.msra.mxu0 %v465
    %490 = vmatprep.subr.bf16.mxu0 0
    %491 = vmatpush1.bf16.msra.mxu0 0
    %492 = vmatprep.subr.bf16.mxu0 0
    %493 = vmatpush1.bf16.msra.mxu0 0
    %494 = vmatprep.subr.bf16.mxu0 0
    %495 = vmatpush1.bf16.msra.mxu0 0
    %496 = vmatprep.subr.bf16.mxu0 0
    %497 = vmatpush1.bf16.msra.mxu0 0
    %498 = vmatprep.subr.bf16.mxu0 0
    %499 = vmatpush1.bf16.msra.mxu0 0
    %500 = vmatprep.subr.bf16.mxu0 0
    %501 = vmatpush1.bf16.msra.mxu0 0
    %502 = vmatprep.subr.bf16.mxu0 0
    %503 = vmatpush1.bf16.msra.mxu0 0
    %504 = vmatprep.subr.bf16.mxu0 0
    %505 = vmatpush1.bf16.msra.mxu0 0
    %506 = vmatprep.mubr.bf16.mxu0 0
    %507 = vmatmul.mubr.bf16.gmra.mrb[0].mxu0 %v182
    %v508 = vpop.f32.mrb[0].mxu0
    %v509 = vadd.f32 0.0, %v508
    %v510 = vpop.f32.mrb[0].mxu0
    %v511 = vpop.f32.mrb[0].mxu0
    %v512 = vadd.f32 0.0, %v511
    %v513 = vpop.f32.mrb[0].mxu0
    %514 = vmatprep.mubr.bf16.mxu0 0
    %515 = vmatmul.mubr.bf16.gmra.mrb[0].mxu0 %v183
    %v516 = vpop.f32.mrb[0].mxu0
    %v517 = vadd.f32 0.0, %v516
    %v518 = vpop.f32.mrb[0].mxu0
    %v519 = vpop.f32.mrb[0].mxu0
    %v520 = vadd.f32 0.0, %v519
    %v521 = vpop.f32.mrb[0].mxu0
    %522 = vdwg.mxu0
    %v523 = vpack.c.bf16 %v286, %v283
    %v524 = vpack.c.bf16 %v294, %v291
    %v525 = vpack.c.bf16 %v399, %v396
    %v526 = vpack.c.bf16 %v407, %v404
    %527 = vmatprep.subr.bf16.mxu0 0
    %528 = vmatpush1.bf16.xpose.msra.mxu0 %v525
    %529 = vmatprep.subr.bf16.mxu0 0
    %530 = vmatpush1.bf16.xpose.msra.mxu0 0
    %531 = vmatprep.subr.bf16.mxu0 0
    %532 = vmatpush1.bf16.xpose.msra.mxu0 0
    %533 = vmatprep.subr.bf16.mxu0 0
    %534 = vmatpush1.bf16.xpose.msra.mxu0 0
    %535 = vmatprep.subr.bf16.mxu0 0
    %536 = vmatpush1.bf16.xpose.msra.mxu0 0
    %537 = vmatprep.subr.bf16.mxu0 0
    %538 = vmatpush1.bf16.xpose.msra.mxu0 0
    %539 = vmatprep.subr.bf16.mxu0 0
    %540 = vmatpush1.bf16.xpose.msra.mxu0 0
    %541 = vmatprep.subr.bf16.mxu0 0
    %542 = vmatpush1.bf16.xpose.msra.mxu0 0
    %543 = vmatprep.subr.bf16.mxu0 0
    %544 = vmatpush1.bf16.xpose.msra.mxu0 0
    %545 = vmatprep.subr.bf16.mxu0 0
    %546 = vmatpush1.bf16.xpose.msra.mxu0 0
    %547 = vmatprep.subr.bf16.mxu0 0
    %548 = vmatpush1.bf16.xpose.msra.mxu0 0
    %549 = vmatprep.subr.bf16.mxu0 0
    %550 = vmatpush1.bf16.xpose.msra.mxu0 0
    %551 = vmatprep.subr.bf16.mxu0 0
    %552 = vmatpush1.bf16.xpose.msra.mxu0 0
    %553 = vmatprep.subr.bf16.mxu0 0
    %554 = vmatpush1.bf16.xpose.msra.mxu0 0
    %555 = vmatprep.subr.bf16.mxu0 0
    %556 = vmatpush1.bf16.xpose.msra.mxu0 0
    %557 = vmatprep.subr.bf16.mxu0 0
    %558 = vmatpush1.bf16.xpose.msra.mxu0 0
    %559 = vmatprep.mubr.bf16.mxu0 0
    %560 = vmatmul.mubr.bf16.gmra.mrb[0].mxu0 %v523
    %v561 = vpop.f32.mrb[0].mxu0
    %v562 = vadd.f32 0.0, %v561
    %v563 = vpop.f32.mrb[0].mxu0
    %v564 = vpop.f32.mrb[0].mxu0
    %v565 = vadd.f32 0.0, %v564
    %v566 = vpop.f32.mrb[0].mxu0
    %567 = vdwg.mxu0
    %568 = vmatprep.subr.bf16.mxu0 0
    %569 = vmatpush1.bf16.xpose.msra.mxu0 %v526
    %570 = vmatprep.subr.bf16.mxu0 0
    %571 = vmatpush1.bf16.xpose.msra.mxu0 0
    %572 = vmatprep.subr.bf16.mxu0 0
    %573 = vmatpush1.bf16.xpose.msra.mxu0 0
    %574 = vmatprep.subr.bf16.mxu0 0
    %575 = vmatpush1.bf16.xpose.msra.mxu0 0
    %576 = vmatprep.subr.bf16.mxu0 0
    %577 = vmatpush1.bf16.xpose.msra.mxu0 0
    %578 = vmatprep.subr.bf16.mxu0 0
    %579 = vmatpush1.bf16.xpose.msra.mxu0 0
    %580 = vmatprep.subr.bf16.mxu0 0
    %581 = vmatpush1.bf16.xpose.msra.mxu0 0
    %582 = vmatprep.subr.bf16.mxu0 0
    %583 = vmatpush1.bf16.xpose.msra.mxu0 0
    %584 = vmatprep.subr.bf16.mxu0 0
    %585 = vmatpush1.bf16.xpose.msra.mxu0 0
    %586 = vmatprep.subr.bf16.mxu0 0
    %587 = vmatpush1.bf16.xpose.msra.mxu0 0
    %588 = vmatprep.subr.bf16.mxu0 0
    %589 = vmatpush1.bf16.xpose.msra.mxu0 0
    %590 = vmatprep.subr.bf16.mxu0 0
    %591 = vmatpush1.bf16.xpose.msra.mxu0 0
    %592 = vmatprep.subr.bf16.mxu0 0
    %593 = vmatpush1.bf16.xpose.msra.mxu0 0
    %594 = vmatprep.subr.bf16.mxu0 0
    %595 = vmatpush1.bf16.xpose.msra.mxu0 0
    %596 = vmatprep.subr.bf16.mxu0 0
    %597 = vmatpush1.bf16.xpose.msra.mxu0 0
    %598 = vmatprep.subr.bf16.mxu0 0
    %599 = vmatpush1.bf16.xpose.msra.mxu0 0
    %600 = vmatprep.mubr.bf16.mxu0 0
    %601 = vmatmul.mubr.bf16.gmra.mrb[0].mxu0 %v524
    %v602 = vpop.f32.mrb[0].mxu0
    %v603 = vadd.f32 0.0, %v602
    %v604 = vpop.f32.mrb[0].mxu0
    %v605 = vpop.f32.mrb[0].mxu0
    %v606 = vadd.f32 0.0, %v605
    %v607 = vpop.f32.mrb[0].mxu0
    %608 = vdwg.mxu0
    %v609 = vmul.f32 %v562, 0.088388346
    %v610 = vmul.f32 %v565, 0.088388346
    %v611 = vmul.f32 %v603, 0.088388346
    %v612 = vmul.f32 %v606, 0.088388346
    %v613 = vsel %vm120, %v609, -inf
    %614 = vmax.xlane.f32.xlu0 %v613
    %v615 = vpop.xlane.xlu0 %614
    %v616 = vsel %vm120, %v610, -inf
    %617 = vmax.xlane.f32.xlu0 %v616
    %v618 = vpop.xlane.xlu0 %617
    %v619 = vsel %vm120, %v611, -inf
    %620 = vmax.xlane.f32.xlu0 %v619
    %v621 = vpop.xlane.xlu0 %620
    %v622 = vsel %vm120, %v612, -inf
    %623 = vmax.xlane.f32.xlu0 %v622
    %v624 = vpop.xlane.xlu0 %623
    %v625 = vsub.f32 %v609, %v615
    %v626 = vsub.f32 %v610, %v618
    %v627 = vsub.f32 %v611, %v621
    %v628 = vsub.f32 %v612, %v624
    %v629 = vmul.f32 %v625, 1.442695
    %v630 = vpow.pop %v629
    %v631 = vmul.f32 %v626, 1.442695
    %v632 = vpow.pop %v631
    %v633 = vmul.f32 %v627, 1.442695
    %v634 = vpow.pop %v633
    %v635 = vmul.f32 %v628, 1.442695
    %v636 = vpow.pop %v635
    %v637 = vsel %vm120, %v630, 0.0
    %638 = vadd.xlane.f32.xlu0 %v637
    %v639 = vpop.xlane.xlu0 %638
    %v640 = vsel %vm120, %v632, 0.0
    %641 = vadd.xlane.f32.xlu0 %v640
    %v642 = vpop.xlane.xlu0 %641
    %v643 = vsel %vm120, %v634, 0.0
    %644 = vadd.xlane.f32.xlu0 %v643
    %v645 = vpop.xlane.xlu0 %644
    %v646 = vsel %vm120, %v636, 0.0
    %647 = vadd.xlane.f32.xlu0 %v646
    %v648 = vpop.xlane.xlu0 %647
    %v649 = vrcp.pop %v639
    %v650 = vrcp.pop %v642
    %v651 = vrcp.pop %v645
    %v652 = vrcp.pop %v648
    %v653 = vmul.f32 %v630, %v649
    %v654 = vmul.f32 %v632, %v650
    %v655 = vmul.f32 %v634, %v651
    %v656 = vmul.f32 %v636, %v652
    %v657 = vpack.c.bf16 %v654, %v653
    %v658 = vpack.c.bf16 %v656, %v655
    %v659 = vpack.c.bf16 %v512, %v509
    %v660 = vpack.c.bf16 %v520, %v517
    %v662 = vsel %vm120, %v657, 0
    %664 = vmatprep.subr.bf16.mxu0 0
    %665 = vmatpush1.bf16.msra.mxu0 %v659
    %666 = vmatprep.subr.bf16.mxu0 0
    %667 = vmatpush1.bf16.msra.mxu0 0
    %668 = vmatprep.subr.bf16.mxu0 0
    %669 = vmatpush1.bf16.msra.mxu0 0
    %670 = vmatprep.subr.bf16.mxu0 0
    %671 = vmatpush1.bf16.msra.mxu0 0
    %672 = vmatprep.subr.bf16.mxu0 0
    %673 = vmatpush1.bf16.msra.mxu0 0
    %674 = vmatprep.subr.bf16.mxu0 0
    %675 = vmatpush1.bf16.msra.mxu0 0
    %676 = vmatprep.subr.bf16.mxu0 0
    %677 = vmatpush1.bf16.msra.mxu0 0
    %678 = vmatprep.subr.bf16.mxu0 0
    %679 = vmatpush1.bf16.msra.mxu0 0
    %680 = vmatprep.subr.bf16.mxu0 0
    %681 = vmatpush1.bf16.msra.mxu0 0
    %682 = vmatprep.subr.bf16.mxu0 0
    %683 = vmatpush1.bf16.msra.mxu0 0
    %684 = vmatprep.subr.bf16.mxu0 0
    %685 = vmatpush1.bf16.msra.mxu0 0
    %686 = vmatprep.subr.bf16.mxu0 0
    %687 = vmatpush1.bf16.msra.mxu0 0
    %688 = vmatprep.subr.bf16.mxu0 0
    %689 = vmatpush1.bf16.msra.mxu0 0
    %690 = vmatprep.subr.bf16.mxu0 0
    %691 = vmatpush1.bf16.msra.mxu0 0
    %692 = vmatprep.subr.bf16.mxu0 0
    %693 = vmatpush1.bf16.msra.mxu0 0
    %694 = vmatprep.subr.bf16.mxu0 0
    %695 = vmatpush1.bf16.msra.mxu0 0
    %696 = vmatprep.mubr.bf16.mxu0 0
    %697 = vmatmul.mubr.bf16.gmra.mrb[0].mxu0 %v662
    %v698 = vpop.f32.mrb[0].mxu0
    %v699 = vadd.f32 0.0, %v698
    %v700 = vpop.f32.mrb[0].mxu0
    %v701 = vpop.f32.mrb[0].mxu0
    %v702 = vadd.f32 0.0, %v701
    %v703 = vpop.f32.mrb[0].mxu0
    %704 = vdwg.mxu0
    %v706 = vsel %vm120, %v658, 0
    %708 = vmatprep.subr.bf16.mxu0 0
    %709 = vmatpush1.bf16.msra.mxu0 %v660
    %710 = vmatprep.subr.bf16.mxu0 0
    %711 = vmatpush1.bf16.msra.mxu0 0
    %712 = vmatprep.subr.bf16.mxu0 0
    %713 = vmatpush1.bf16.msra.mxu0 0
    %714 = vmatprep.subr.bf16.mxu0 0
    %715 = vmatpush1.bf16.msra.mxu0 0
    %716 = vmatprep.subr.bf16.mxu0 0
    %717 = vmatpush1.bf16.msra.mxu0 0
    %718 = vmatprep.subr.bf16.mxu0 0
    %719 = vmatpush1.bf16.msra.mxu0 0
    %720 = vmatprep.subr.bf16.mxu0 0
    %721 = vmatpush1.bf16.msra.mxu0 0
    %722 = vmatprep.subr.bf16.mxu0 0
    %723 = vmatpush1.bf16.msra.mxu0 0
    %724 = vmatprep.subr.bf16.mxu0 0
    %725 = vmatpush1.bf16.msra.mxu0 0
    %726 = vmatprep.subr.bf16.mxu0 0
    %727 = vmatpush1.bf16.msra.mxu0 0
    %728 = vmatprep.subr.bf16.mxu0 0
    %729 = vmatpush1.bf16.msra.mxu0 0
    %730 = vmatprep.subr.bf16.mxu0 0
    %731 = vmatpush1.bf16.msra.mxu0 0
    %732 = vmatprep.subr.bf16.mxu0 0
    %733 = vmatpush1.bf16.msra.mxu0 0
    %734 = vmatprep.subr.bf16.mxu0 0
    %735 = vmatpush1.bf16.msra.mxu0 0
    %736 = vmatprep.subr.bf16.mxu0 0
    %737 = vmatpush1.bf16.msra.mxu0 0
    %738 = vmatprep.subr.bf16.mxu0 0
    %739 = vmatpush1.bf16.msra.mxu0 0
    %740 = vmatprep.mubr.bf16.mxu0 0
    %741 = vmatmul.mubr.bf16.gmra.mrb[0].mxu0 %v706
    %v742 = vpop.f32.mrb[0].mxu0
    %v743 = vadd.f32 0.0, %v742
    %v744 = vpop.f32.mrb[0].mxu0
    %v745 = vpop.f32.mrb[0].mxu0
    %v746 = vadd.f32 0.0, %v745
    %v747 = vpop.f32.mrb[0].mxu0
    %748 = vdwg.mxu0
    %v749 = vpack.c.bf16 %v702, %v699
    %v750 = vpack.c.bf16 %v746, %v743
    %v751 = vld [vmem:[#allocation5] sm:$0xf]
    %v752 = vld [vmem:[#allocation5 + $0x4] sm:$0xf]
    %v753 = vld [vmem:[#allocation5 + $0x8] sm:$0xf]
    %v754 = vld [vmem:[#allocation5 + $0xc] sm:$0xf]
    %v755 = vld [vmem:[#allocation5 + $0x10] sm:$0xf]
    %v756 = vld [vmem:[#allocation5 + $0x14] sm:$0xf]
    %v757 = vld [vmem:[#allocation5 + $0x18] sm:$0xf]
    %v758 = vld [vmem:[#allocation5 + $0x1c] sm:$0xf]
    %v759 = vld [vmem:[#allocation5 + $0x20] sm:$0xf]
    %v760 = vld [vmem:[#allocation5 + $0x24] sm:$0xf]
    %v761 = vld [vmem:[#allocation5 + $0x28] sm:$0xf]
    %v762 = vld [vmem:[#allocation5 + $0x2c] sm:$0xf]
    %v763 = vld [vmem:[#allocation5 + $0x30] sm:$0xf]
    %v764 = vld [vmem:[#allocation5 + $0x34] sm:$0xf]
    %v765 = vld [vmem:[#allocation5 + $0x38] sm:$0xf]
    %v766 = vld [vmem:[#allocation5 + $0x3c] sm:$0xf]
    %v783 = vunpack.c.l.b16 %v751
    %v784 = vunpack.c.l.b16 %v752
    %v785 = vunpack.c.l.b16 %v753
    %v786 = vunpack.c.l.b16 %v754
    %v787 = vunpack.c.l.b16 %v755
    %v788 = vunpack.c.l.b16 %v756
    %v789 = vunpack.c.l.b16 %v757
    %v790 = vunpack.c.l.b16 %v758
    %v791 = vunpack.c.l.b16 %v759
    %v792 = vunpack.c.l.b16 %v760
    %v793 = vunpack.c.l.b16 %v761
    %v794 = vunpack.c.l.b16 %v762
    %v795 = vunpack.c.l.b16 %v763
    %v796 = vunpack.c.l.b16 %v764
    %v797 = vunpack.c.l.b16 %v765
    %v798 = vunpack.c.l.b16 %v766
    %v799 = vpack.c.b16 %v784, %v783
    %v800 = vpack.c.b16 %v786, %v785
    %v801 = vpack.c.b16 %v788, %v787
    %v802 = vpack.c.b16 %v790, %v789
    %v803 = vpack.c.b16 %v792, %v791
    %v804 = vpack.c.b16 %v794, %v793
    %v805 = vpack.c.b16 %v796, %v795
    %v806 = vpack.c.b16 %v798, %v797
    %815 = vmatprep.subr.bf16.mxu0 0
    %816 = vmatpush1.bf16.msra.mxu0 %v799
    %817 = vmatprep.subr.bf16.mxu0 0
    %818 = vmatpush1.bf16.msra.mxu0 %v800
    %819 = vmatprep.subr.bf16.mxu0 0
    %820 = vmatpush1.bf16.msra.mxu0 %v801
    %821 = vmatprep.subr.bf16.mxu0 0
    %822 = vmatpush1.bf16.msra.mxu0 %v802
    %823 = vmatprep.subr.bf16.mxu0 0
    %824 = vmatpush1.bf16.msra.mxu0 %v803
    %825 = vmatprep.subr.bf16.mxu0 0
    %826 = vmatpush1.bf16.msra.mxu0 %v804
    %827 = vmatprep.subr.bf16.mxu0 0
    %828 = vmatpush1.bf16.msra.mxu0 %v805
    %829 = vmatprep.subr.bf16.mxu0 0
    %830 = vmatpush1.bf16.msra.mxu0 %v806
    %831 = vmatprep.subr.bf16.mxu0 0
    %832 = vmatpush1.bf16.msra.mxu0 0
    %833 = vmatprep.subr.bf16.mxu0 0
    %834 = vmatpush1.bf16.msra.mxu0 0
    %835 = vmatprep.subr.bf16.mxu0 0
    %836 = vmatpush1.bf16.msra.mxu0 0
    %837 = vmatprep.subr.bf16.mxu0 0
    %838 = vmatpush1.bf16.msra.mxu0 0
    %839 = vmatprep.subr.bf16.mxu0 0
    %840 = vmatpush1.bf16.msra.mxu0 0
    %841 = vmatprep.subr.bf16.mxu0 0
    %842 = vmatpush1.bf16.msra.mxu0 0
    %843 = vmatprep.subr.bf16.mxu0 0
    %844 = vmatpush1.bf16.msra.mxu0 0
    %845 = vmatprep.subr.bf16.mxu0 0
    %846 = vmatpush1.bf16.msra.mxu0 0
    %847 = vmatprep.mubr.bf16.mxu0 0
    %848 = vmatmul.mubr.bf16.gmra.mrb[0].mxu0 %v749
    %v849 = vpop.f32.mrb[0].mxu0
    %v850 = vadd.f32 0.0, %v849
    %v851 = vpop.f32.mrb[0].mxu0
    %v852 = vpop.f32.mrb[0].mxu0
    %v853 = vadd.f32 0.0, %v852
    %v854 = vpop.f32.mrb[0].mxu0
    %855 = vmatprep.mubr.bf16.mxu0 0
    %856 = vmatmul.mubr.bf16.gmra.mrb[0].mxu0 %v750
    %v857 = vpop.f32.mrb[0].mxu0
    %v858 = vadd.f32 0.0, %v857
    %v859 = vpop.f32.mrb[0].mxu0
    %v860 = vpop.f32.mrb[0].mxu0
    %v861 = vadd.f32 0.0, %v860
    %v862 = vpop.f32.mrb[0].mxu0
    %863 = vdwg.mxu0
    %v864 = vadd.f32 %v178, %v850
    %v865 = vadd.f32 %v179, %v853
    %v866 = vadd.f32 %v180, %v858
    %v867 = vadd.f32 %v181, %v861
    %v868 = vpack.c.bf16 %v865, %v864
    %v869 = vpack.c.bf16 %v867, %v866
    %v870 = vld [vmem:[%s9] sm:$0xff]
    %v871 = vld [vmem:[%s9 + $0x8] sm:$0xff]
    %v872 = vld [vmem:[%s9 + $0x10] sm:$0xff]
    %v873 = vld [vmem:[%s9 + $0x18] sm:$0xff]
    %v874 = vld [vmem:[%s9 + $0x20] sm:$0xff]
    %v875 = vld [vmem:[%s9 + $0x28] sm:$0xff]
    %v876 = vld [vmem:[%s9 + $0x30] sm:$0xff]
    %v877 = vld [vmem:[%s9 + $0x38] sm:$0xff]
    %v878 = vld [vmem:[%s9 + $0x40] sm:$0xff]
    %v879 = vld [vmem:[%s9 + $0x48] sm:$0xff]
    %v880 = vld [vmem:[%s9 + $0x50] sm:$0xff]
    %v881 = vld [vmem:[%s9 + $0x58] sm:$0xff]
    %v882 = vld [vmem:[%s9 + $0x60] sm:$0xff]
    %v883 = vld [vmem:[%s9 + $0x68] sm:$0xff]
    %v884 = vld [vmem:[%s9 + $0x70] sm:$0xff]
    %v885 = vld [vmem:[%s9 + $0x78] sm:$0xff]
    %v886 = vld [vmem:[%s9 + $0x80] sm:$0xff]
    %v887 = vld [vmem:[%s9 + $0x88] sm:$0xff]
    %v888 = vld [vmem:[%s9 + $0x90] sm:$0xff]
    %v889 = vld [vmem:[%s9 + $0x98] sm:$0xff]
    %v890 = vld [vmem:[%s9 + $0xa0] sm:$0xff]
    %v891 = vld [vmem:[%s9 + $0xa8] sm:$0xff]
    %v892 = vld [vmem:[%s9 + $0xb0] sm:$0xff]
    %v893 = vld [vmem:[%s9 + $0xb8] sm:$0xff]
    %v894 = vld [vmem:[%s9 + $0xc0] sm:$0xff]
    %v895 = vld [vmem:[%s9 + $0xc8] sm:$0xff]
    %v896 = vld [vmem:[%s9 + $0xd0] sm:$0xff]
    %v897 = vld [vmem:[%s9 + $0xd8] sm:$0xff]
    %v898 = vld [vmem:[%s9 + $0xe0] sm:$0xff]
    %v899 = vld [vmem:[%s9 + $0xe8] sm:$0xff]
    %v900 = vld [vmem:[%s9 + $0xf0] sm:$0xff]
    %v901 = vld [vmem:[%s9 + $0xf8] sm:$0xff]
    %v934 = vunpack.c.l.b16 %v870
    %v935 = vunpack.c.h.b16 %v870
    %v936 = vunpack.c.l.b16 %v871
    %v937 = vunpack.c.h.b16 %v871
    %v938 = vunpack.c.l.b16 %v872
    %v939 = vunpack.c.h.b16 %v872
    %v940 = vunpack.c.l.b16 %v873
    %v941 = vunpack.c.h.b16 %v873
    %v942 = vunpack.c.l.b16 %v874
    %v943 = vunpack.c.h.b16 %v874
    %v944 = vunpack.c.l.b16 %v875
    %v945 = vunpack.c.h.b16 %v875
    %v946 = vunpack.c.l.b16 %v876
    %v947 = vunpack.c.h.b16 %v876
    %v948 = vunpack.c.l.b16 %v877
    %v949 = vunpack.c.h.b16 %v877
    %v950 = vunpack.c.l.b16 %v878
    %v951 = vunpack.c.h.b16 %v878
    %v952 = vunpack.c.l.b16 %v879
    %v953 = vunpack.c.h.b16 %v879
    %v954 = vunpack.c.l.b16 %v880
    %v955 = vunpack.c.h.b16 %v880
    %v956 = vunpack.c.l.b16 %v881
    %v957 = vunpack.c.h.b16 %v881
    %v958 = vunpack.c.l.b16 %v882
    %v959 = vunpack.c.h.b16 %v882
    %v960 = vunpack.c.l.b16 %v883
    %v961 = vunpack.c.h.b16 %v883
    %v962 = vunpack.c.l.b16 %v884
    %v963 = vunpack.c.h.b16 %v884
    %v964 = vunpack.c.l.b16 %v885
    %v965 = vunpack.c.h.b16 %v885
    %v966 = vunpack.c.l.b16 %v886
    %v967 = vunpack.c.h.b16 %v886
    %v968 = vunpack.c.l.b16 %v887
    %v969 = vunpack.c.h.b16 %v887
    %v970 = vunpack.c.l.b16 %v888
    %v971 = vunpack.c.h.b16 %v888
    %v972 = vunpack.c.l.b16 %v889
    %v973 = vunpack.c.h.b16 %v889
    %v974 = vunpack.c.l.b16 %v890
    %v975 = vunpack.c.h.b16 %v890
    %v976 = vunpack.c.l.b16 %v891
    %v977 = vunpack.c.h.b16 %v891
    %v978 = vunpack.c.l.b16 %v892
    %v979 = vunpack.c.h.b16 %v892
    %v980 = vunpack.c.l.b16 %v893
    %v981 = vunpack.c.h.b16 %v893
    %v982 = vunpack.c.l.b16 %v894
    %v983 = vunpack.c.h.b16 %v894
    %v984 = vunpack.c.l.b16 %v895
    %v985 = vunpack.c.h.b16 %v895
    %v986 = vunpack.c.l.b16 %v896
    %v987 = vunpack.c.h.b16 %v896
    %v988 = vunpack.c.l.b16 %v897
    %v989 = vunpack.c.h.b16 %v897
    %v990 = vunpack.c.l.b16 %v898
    %v991 = vunpack.c.h.b16 %v898
    %v992 = vunpack.c.l.b16 %v899
    %v993 = vunpack.c.h.b16 %v899
    %v994 = vunpack.c.l.b16 %v900
    %v995 = vunpack.c.h.b16 %v900
    %v996 = vunpack.c.l.b16 %v901
    %v997 = vunpack.c.h.b16 %v901
    %v998 = vpack.c.b16 %v938, %v934
    %v999 = vpack.c.b16 %v939, %v935
    %v1000 = vpack.c.b16 %v940, %v936
    %v1001 = vpack.c.b16 %v941, %v937
    %v1002 = vpack.c.b16 %v946, %v942
    %v1003 = vpack.c.b16 %v947, %v943
    %v1004 = vpack.c.b16 %v948, %v944
    %v1005 = vpack.c.b16 %v949, %v945
    %v1006 = vpack.c.b16 %v954, %v950
    %v1007 = vpack.c.b16 %v955, %v951
    %v1008 = vpack.c.b16 %v956, %v952
    %v1009 = vpack.c.b16 %v957, %v953
    %v1010 = vpack.c.b16 %v962, %v958
    %v1011 = vpack.c.b16 %v963, %v959
    %v1012 = vpack.c.b16 %v964, %v960
    %v1013 = vpack.c.b16 %v965, %v961
    %v1014 = vpack.c.b16 %v970, %v966
    %v1015 = vpack.c.b16 %v971, %v967
    %v1016 = vpack.c.b16 %v972, %v968
    %v1017 = vpack.c.b16 %v973, %v969
    %v1018 = vpack.c.b16 %v978, %v974
    %v1019 = vpack.c.b16 %v979, %v975
    %v1020 = vpack.c.b16 %v980, %v976
    %v1021 = vpack.c.b16 %v981, %v977
    %v1022 = vpack.c.b16 %v986, %v982
    %v1023 = vpack.c.b16 %v987, %v983
    %v1024 = vpack.c.b16 %v988, %v984
    %v1025 = vpack.c.b16 %v989, %v985
    %v1026 = vpack.c.b16 %v994, %v990
    %v1027 = vpack.c.b16 %v995, %v991
    %v1028 = vpack.c.b16 %v996, %v992
    %v1029 = vpack.c.b16 %v997, %v993
    %1062 = vmatprep.subr.bf16.mxu0 %v999
    %1063 = vmatpush1.bf16.msra.mxu0 %v998
    %1064 = vmatprep.subr.bf16.mxu0 %v1003
    %1065 = vmatpush1.bf16.msra.mxu0 %v1002
    %1066 = vmatprep.subr.bf16.mxu0 %v1007
    %1067 = vmatpush1.bf16.msra.mxu0 %v1006
    %1068 = vmatprep.subr.bf16.mxu0 %v1011
    %1069 = vmatpush1.bf16.msra.mxu0 %v1010
    %1070 = vmatprep.subr.bf16.mxu0 %v1015
    %1071 = vmatpush1.bf16.msra.mxu0 %v1014
    %1072 = vmatprep.subr.bf16.mxu0 %v1019
    %1073 = vmatpush1.bf16.msra.mxu0 %v1018
    %1074 = vmatprep.subr.bf16.mxu0 %v1023
    %1075 = vmatpush1.bf16.msra.mxu0 %v1022
    %1076 = vmatprep.subr.bf16.mxu0 %v1027
    %1077 = vmatpush1.bf16.msra.mxu0 %v1026
    %1078 = vmatprep.subr.bf16.mxu0 0
    %1079 = vmatpush1.bf16.msra.mxu0 0
    %1080 = vmatprep.subr.bf16.mxu0 0
    %1081 = vmatpush1.bf16.msra.mxu0 0
    %1082 = vmatprep.subr.bf16.mxu0 0
    %1083 = vmatpush1.bf16.msra.mxu0 0
    %1084 = vmatprep.subr.bf16.mxu0 0
    %1085 = vmatpush1.bf16.msra.mxu0 0
    %1086 = vmatprep.subr.bf16.mxu0 0
    %1087 = vmatpush1.bf16.msra.mxu0 0
    %1088 = vmatprep.subr.bf16.mxu0 0
    %1089 = vmatpush1.bf16.msra.mxu0 0
    %1090 = vmatprep.subr.bf16.mxu0 0
    %1091 = vmatpush1.bf16.msra.mxu0 0
    %1092 = vmatprep.subr.bf16.mxu0 0
    %1093 = vmatpush1.bf16.msra.mxu0 0
    %1094 = vmatprep.mubr.bf16.mxu0 0
    %1095 = vmatmul.mubr.bf16.gmra.mrb[0].mxu0 %v868
    %v1096 = vpop.f32.mrb[0].mxu0
    %v1097 = vadd.f32 0.0, %v1096
    %v1098 = vpop.f32.mrb[0].mxu0
    %v1099 = vadd.f32 0.0, %v1098
    %v1100 = vpop.f32.mrb[0].mxu0
    %v1101 = vadd.f32 0.0, %v1100
    %v1102 = vpop.f32.mrb[0].mxu0
    %v1103 = vadd.f32 0.0, %v1102
    %1104 = vmatprep.mubr.bf16.mxu0 0
    %1105 = vmatmul.mubr.bf16.gmra.mrb[0].mxu0 %v869
    %v1106 = vpop.f32.mrb[0].mxu0
    %v1107 = vadd.f32 0.0, %v1106
    %v1108 = vpop.f32.mrb[0].mxu0
    %v1109 = vadd.f32 0.0, %v1108
    %v1110 = vpop.f32.mrb[0].mxu0
    %v1111 = vadd.f32 0.0, %v1110
    %v1112 = vpop.f32.mrb[0].mxu0
    %v1113 = vadd.f32 0.0, %v1112
    %1114 = vdwg.mxu0
    %1115 = vmatprep.subr.bf16.mxu0 %v1001
    %1116 = vmatpush1.bf16.msra.mxu0 %v1000
    %1117 = vmatprep.subr.bf16.mxu0 %v1005
    %1118 = vmatpush1.bf16.msra.mxu0 %v1004
    %1119 = vmatprep.subr.bf16.mxu0 %v1009
    %1120 = vmatpush1.bf16.msra.mxu0 %v1008
    %1121 = vmatprep.subr.bf16.mxu0 %v1013
    %1122 = vmatpush1.bf16.msra.mxu0 %v1012
    %1123 = vmatprep.subr.bf16.mxu0 %v1017
    %1124 = vmatpush1.bf16.msra.mxu0 %v1016
    %1125 = vmatprep.subr.bf16.mxu0 %v1021
    %1126 = vmatpush1.bf16.msra.mxu0 %v1020
    %1127 = vmatprep.subr.bf16.mxu0 %v1025
    %1128 = vmatpush1.bf16.msra.mxu0 %v1024
    %1129 = vmatprep.subr.bf16.mxu0 %v1029
    %1130 = vmatpush1.bf16.msra.mxu0 %v1028
    %1131 = vmatprep.subr.bf16.mxu0 0
    %1132 = vmatpush1.bf16.msra.mxu0 0
    %1133 = vmatprep.subr.bf16.mxu0 0
    %1134 = vmatpush1.bf16.msra.mxu0 0
    %1135 = vmatprep.subr.bf16.mxu0 0
    %1136 = vmatpush1.bf16.msra.mxu0 0
    %1137 = vmatprep.subr.bf16.mxu0 0
    %1138 = vmatpush1.bf16.msra.mxu0 0
    %1139 = vmatprep.subr.bf16.mxu0 0
    %1140 = vmatpush1.bf16.msra.mxu0 0
    %1141 = vmatprep.subr.bf16.mxu0 0
    %1142 = vmatpush1.bf16.msra.mxu0 0
    %1143 = vmatprep.subr.bf16.mxu0 0
    %1144 = vmatpush1.bf16.msra.mxu0 0
    %1145 = vmatprep.subr.bf16.mxu0 0
    %1146 = vmatpush1.bf16.msra.mxu0 0
    %1147 = vmatprep.mubr.bf16.mxu0 0
    %1148 = vmatmul.mubr.bf16.gmra.mrb[0].mxu0 %v868
    %v1149 = vpop.f32.mrb[0].mxu0
    %v1150 = vadd.f32 0.0, %v1149
    %v1151 = vpop.f32.mrb[0].mxu0
    %v1152 = vadd.f32 0.0, %v1151
    %v1153 = vpop.f32.mrb[0].mxu0
    %v1154 = vadd.f32 0.0, %v1153
    %v1155 = vpop.f32.mrb[0].mxu0
    %v1156 = vadd.f32 0.0, %v1155
    %1157 = vmatprep.mubr.bf16.mxu0 0
    %1158 = vmatmul.mubr.bf16.gmra.mrb[0].mxu0 %v869
    %v1159 = vpop.f32.mrb[0].mxu0
    %v1160 = vadd.f32 0.0, %v1159
    %v1161 = vpop.f32.mrb[0].mxu0
    %v1162 = vadd.f32 0.0, %v1161
    %v1163 = vpop.f32.mrb[0].mxu0
    %v1164 = vadd.f32 0.0, %v1163
    %v1165 = vpop.f32.mrb[0].mxu0
    %v1166 = vadd.f32 0.0, %v1165
    %1167 = vdwg.mxu0
    %v1168 = vmul.f32 %v1097, 0.5
    %v1169 = vmul.f32 %v1099, 0.5
    %v1170 = vmul.f32 %v1150, 0.5
    %v1171 = vmul.f32 %v1152, 0.5
    %v1172 = vmul.f32 %v1101, 0.5
    %v1173 = vmul.f32 %v1103, 0.5
    %v1174 = vmul.f32 %v1154, 0.5
    %v1175 = vmul.f32 %v1156, 0.5
    %v1176 = vmul.f32 %v1107, 0.5
    %v1177 = vmul.f32 %v1109, 0.5
    %v1178 = vmul.f32 %v1160, 0.5
    %v1179 = vmul.f32 %v1162, 0.5
    %v1180 = vmul.f32 %v1111, 0.5
    %v1181 = vmul.f32 %v1113, 0.5
    %v1182 = vmul.f32 %v1164, 0.5
    %v1183 = vmul.f32 %v1166, 0.5
    %v1184 = vmul.f32 %v1097, 0.044715
    %v1185 = vmul.f32 %v1099, 0.044715
    %v1186 = vmul.f32 %v1150, 0.044715
    %v1187 = vmul.f32 %v1152, 0.044715
    %v1188 = vmul.f32 %v1101, 0.044715
    %v1189 = vmul.f32 %v1103, 0.044715
    %v1190 = vmul.f32 %v1154, 0.044715
    %v1191 = vmul.f32 %v1156, 0.044715
    %v1192 = vmul.f32 %v1107, 0.044715
    %v1193 = vmul.f32 %v1109, 0.044715
    %v1194 = vmul.f32 %v1160, 0.044715
    %v1195 = vmul.f32 %v1162, 0.044715
    %v1196 = vmul.f32 %v1111, 0.044715
    %v1197 = vmul.f32 %v1113, 0.044715
    %v1198 = vmul.f32 %v1164, 0.044715
    %v1199 = vmul.f32 %v1166, 0.044715
    %v1200 = vmul.f32 %v1184, %v1097
    %v1201 = vmul.f32 %v1185, %v1099
    %v1202 = vmul.f32 %v1186, %v1150
    %v1203 = vmul.f32 %v1187, %v1152
    %v1204 = vmul.f32 %v1188, %v1101
    %v1205 = vmul.f32 %v1189, %v1103
    %v1206 = vmul.f32 %v1190, %v1154
    %v1207 = vmul.f32 %v1191, %v1156
    %v1208 = vmul.f32 %v1192, %v1107
    %v1209 = vmul.f32 %v1193, %v1109
    %v1210 = vmul.f32 %v1194, %v1160
    %v1211 = vmul.f32 %v1195, %v1162
    %v1212 = vmul.f32 %v1196, %v1111
    %v1213 = vmul.f32 %v1197, %v1113
    %v1214 = vmul.f32 %v1198, %v1164
    %v1215 = vmul.f32 %v1199, %v1166
    %v1216 = vmul.f32 %v1200, %v1097
    %v1217 = vmul.f32 %v1201, %v1099
    %v1218 = vmul.f32 %v1202, %v1150
    %v1219 = vmul.f32 %v1203, %v1152
    %v1220 = vmul.f32 %v1204, %v1101
    %v1221 = vmul.f32 %v1205, %v1103
    %v1222 = vmul.f32 %v1206, %v1154
    %v1223 = vmul.f32 %v1207, %v1156
    %v1224 = vmul.f32 %v1208, %v1107
    %v1225 = vmul.f32 %v1209, %v1109
    %v1226 = vmul.f32 %v1210, %v1160
    %v1227 = vmul.f32 %v1211, %v1162
    %v1228 = vmul.f32 %v1212, %v1111
    %v1229 = vmul.f32 %v1213, %v1113
    %v1230 = vmul.f32 %v1214, %v1164
    %v1231 = vmul.f32 %v1215, %v1166
    %v1232 = vadd.f32 %v1097, %v1216
    %v1233 = vadd.f32 %v1099, %v1217
    %v1234 = vadd.f32 %v1150, %v1218
    %v1235 = vadd.f32 %v1152, %v1219
    %v1236 = vadd.f32 %v1101, %v1220
    %v1237 = vadd.f32 %v1103, %v1221
    %v1238 = vadd.f32 %v1154, %v1222
    %v1239 = vadd.f32 %v1156, %v1223
    %v1240 = vadd.f32 %v1107, %v1224
    %v1241 = vadd.f32 %v1109, %v1225
    %v1242 = vadd.f32 %v1160, %v1226
    %v1243 = vadd.f32 %v1162, %v1227
    %v1244 = vadd.f32 %v1111, %v1228
    %v1245 = vadd.f32 %v1113, %v1229
    %v1246 = vadd.f32 %v1164, %v1230
    %v1247 = vadd.f32 %v1166, %v1231
    %v1248 = vmul.f32 %v1232, 0.7978846
    %v1249 = vmul.f32 %v1233, 0.7978846
    %v1250 = vmul.f32 %v1234, 0.7978846
    %v1251 = vmul.f32 %v1235, 0.7978846
    %v1252 = vmul.f32 %v1236, 0.7978846
    %v1253 = vmul.f32 %v1237, 0.7978846
    %v1254 = vmul.f32 %v1238, 0.7978846
    %v1255 = vmul.f32 %v1239, 0.7978846
    %v1256 = vmul.f32 %v1240, 0.7978846
    %v1257 = vmul.f32 %v1241, 0.7978846
    %v1258 = vmul.f32 %v1242, 0.7978846
    %v1259 = vmul.f32 %v1243, 0.7978846
    %v1260 = vmul.f32 %v1244, 0.7978846
    %v1261 = vmul.f32 %v1245, 0.7978846
    %v1262 = vmul.f32 %v1246, 0.7978846
    %v1263 = vmul.f32 %v1247, 0.7978846
    %v1264 = vtanh.pop %v1248
    %v1265 = vtanh.pop %v1249
    %v1266 = vtanh.pop %v1250
    %v1267 = vtanh.pop %v1251
    %v1268 = vtanh.pop %v1252
    %v1269 = vtanh.pop %v1253
    %v1270 = vtanh.pop %v1254
    %v1271 = vtanh.pop %v1255
    %v1272 = vtanh.pop %v1256
    %v1273 = vtanh.pop %v1257
    %v1274 = vtanh.pop %v1258
    %v1275 = vtanh.pop %v1259
    %v1276 = vtanh.pop %v1260
    %v1277 = vtanh.pop %v1261
    %v1278 = vtanh.pop %v1262
    %v1279 = vtanh.pop %v1263
    %v1280 = vadd.f32 %v1264, 1.0
    %v1281 = vadd.f32 %v1265, 1.0
    %v1282 = vadd.f32 %v1266, 1.0
    %v1283 = vadd.f32 %v1267, 1.0
    %v1284 = vadd.f32 %v1268, 1.0
    %v1285 = vadd.f32 %v1269, 1.0
    %v1286 = vadd.f32 %v1270, 1.0
    %v1287 = vadd.f32 %v1271, 1.0
    %v1288 = vadd.f32 %v1272, 1.0
    %v1289 = vadd.f32 %v1273, 1.0
    %v1290 = vadd.f32 %v1274, 1.0
    %v1291 = vadd.f32 %v1275, 1.0
    %v1292 = vadd.f32 %v1276, 1.0
    %v1293 = vadd.f32 %v1277, 1.0
    %v1294 = vadd.f32 %v1278, 1.0
    %v1295 = vadd.f32 %v1279, 1.0
    %v1296 = vmul.f32 %v1168, %v1280
    %v1297 = vmul.f32 %v1169, %v1281
    %v1298 = vmul.f32 %v1170, %v1282
    %v1299 = vmul.f32 %v1171, %v1283
    %v1300 = vmul.f32 %v1172, %v1284
    %v1301 = vmul.f32 %v1173, %v1285
    %v1302 = vmul.f32 %v1174, %v1286
    %v1303 = vmul.f32 %v1175, %v1287
    %v1304 = vmul.f32 %v1176, %v1288
    %v1305 = vmul.f32 %v1177, %v1289
    %v1306 = vmul.f32 %v1178, %v1290
    %v1307 = vmul.f32 %v1179, %v1291
    %v1308 = vmul.f32 %v1180, %v1292
    %v1309 = vmul.f32 %v1181, %v1293
    %v1310 = vmul.f32 %v1182, %v1294
    %v1311 = vmul.f32 %v1183, %v1295
    %v1312 = vpack.c.bf16 %v1300, %v1296
    %v1313 = vpack.c.bf16 %v1301, %v1297
    %v1314 = vpack.c.bf16 %v1302, %v1298
    %v1315 = vpack.c.bf16 %v1303, %v1299
    %v1316 = vpack.c.bf16 %v1308, %v1304
    %v1317 = vpack.c.bf16 %v1309, %v1305
    %v1318 = vpack.c.bf16 %v1310, %v1306
    %v1319 = vpack.c.bf16 %v1311, %v1307
    %v1320 = vld [vmem:[#allocation7] sm:$0xf]
    %v1321 = vld [vmem:[#allocation7 + $0x4] sm:$0xf]
    %v1322 = vld [vmem:[#allocation7 + $0x8] sm:$0xf]
    %v1323 = vld [vmem:[#allocation7 + $0xc] sm:$0xf]
    %v1324 = vld [vmem:[#allocation7 + $0x10] sm:$0xf]
    %v1325 = vld [vmem:[#allocation7 + $0x14] sm:$0xf]
    %v1326 = vld [vmem:[#allocation7 + $0x18] sm:$0xf]
    %v1327 = vld [vmem:[#allocation7 + $0x1c] sm:$0xf]
    %v1328 = vld [vmem:[#allocation7 + $0x20] sm:$0xf]
    %v1329 = vld [vmem:[#allocation7 + $0x24] sm:$0xf]
    %v1330 = vld [vmem:[#allocation7 + $0x28] sm:$0xf]
    %v1331 = vld [vmem:[#allocation7 + $0x2c] sm:$0xf]
    %v1332 = vld [vmem:[#allocation7 + $0x30] sm:$0xf]
    %v1333 = vld [vmem:[#allocation7 + $0x34] sm:$0xf]
    %v1334 = vld [vmem:[#allocation7 + $0x38] sm:$0xf]
    %v1335 = vld [vmem:[#allocation7 + $0x3c] sm:$0xf]
    %v1336 = vld [vmem:[#allocation7 + $0x40] sm:$0xf]
    %v1337 = vld [vmem:[#allocation7 + $0x44] sm:$0xf]
    %v1338 = vld [vmem:[#allocation7 + $0x48] sm:$0xf]
    %v1339 = vld [vmem:[#allocation7 + $0x4c] sm:$0xf]
    %v1340 = vld [vmem:[#allocation7 + $0x50] sm:$0xf]
    %v1341 = vld [vmem:[#allocation7 + $0x54] sm:$0xf]
    %v1342 = vld [vmem:[#allocation7 + $0x58] sm:$0xf]
    %v1343 = vld [vmem:[#allocation7 + $0x5c] sm:$0xf]
    %v1344 = vld [vmem:[#allocation7 + $0x60] sm:$0xf]
    %v1345 = vld [vmem:[#allocation7 + $0x64] sm:$0xf]
    %v1346 = vld [vmem:[#allocation7 + $0x68] sm:$0xf]
    %v1347 = vld [vmem:[#allocation7 + $0x6c] sm:$0xf]
    %v1348 = vld [vmem:[#allocation7 + $0x70] sm:$0xf]
    %v1349 = vld [vmem:[#allocation7 + $0x74] sm:$0xf]
    %v1350 = vld [vmem:[#allocation7 + $0x78] sm:$0xf]
    %v1351 = vld [vmem:[#allocation7 + $0x7c] sm:$0xf]
    %v1352 = vld [vmem:[#allocation7 + $0x80] sm:$0xf]
    %v1353 = vld [vmem:[#allocation7 + $0x84] sm:$0xf]
    %v1354 = vld [vmem:[#allocation7 + $0x88] sm:$0xf]
    %v1355 = vld [vmem:[#allocation7 + $0x8c] sm:$0xf]
    %v1356 = vld [vmem:[#allocation7 + $0x90] sm:$0xf]
    %v1357 = vld [vmem:[#allocation7 + $0x94] sm:$0xf]
    %v1358 = vld [vmem:[#allocation7 + $0x98] sm:$0xf]
    %v1359 = vld [vmem:[#allocation7 + $0x9c] sm:$0xf]
    %v1360 = vld [vmem:[#allocation7 + $0xa0] sm:$0xf]
    %v1361 = vld [vmem:[#allocation7 + $0xa4] sm:$0xf]
    %v1362 = vld [vmem:[#allocation7 + $0xa8] sm:$0xf]
    %v1363 = vld [vmem:[#allocation7 + $0xac] sm:$0xf]
    %v1364 = vld [vmem:[#allocation7 + $0xb0] sm:$0xf]
    %v1365 = vld [vmem:[#allocation7 + $0xb4] sm:$0xf]
    %v1366 = vld [vmem:[#allocation7 + $0xb8] sm:$0xf]
    %v1367 = vld [vmem:[#allocation7 + $0xbc] sm:$0xf]
    %v1368 = vld [vmem:[#allocation7 + $0xc0] sm:$0xf]
    %v1369 = vld [vmem:[#allocation7 + $0xc4] sm:$0xf]
    %v1370 = vld [vmem:[#allocation7 + $0xc8] sm:$0xf]
    %v1371 = vld [vmem:[#allocation7 + $0xcc] sm:$0xf]
    %v1372 = vld [vmem:[#allocation7 + $0xd0] sm:$0xf]
    %v1373 = vld [vmem:[#allocation7 + $0xd4] sm:$0xf]
    %v1374 = vld [vmem:[#allocation7 + $0xd8] sm:$0xf]
    %v1375 = vld [vmem:[#allocation7 + $0xdc] sm:$0xf]
    %v1376 = vld [vmem:[#allocation7 + $0xe0] sm:$0xf]
    %v1377 = vld [vmem:[#allocation7 + $0xe4] sm:$0xf]
    %v1378 = vld [vmem:[#allocation7 + $0xe8] sm:$0xf]
    %v1379 = vld [vmem:[#allocation7 + $0xec] sm:$0xf]
    %v1380 = vld [vmem:[#allocation7 + $0xf0] sm:$0xf]
    %v1381 = vld [vmem:[#allocation7 + $0xf4] sm:$0xf]
    %v1382 = vld [vmem:[#allocation7 + $0xf8] sm:$0xf]
    %v1383 = vld [vmem:[#allocation7 + $0xfc] sm:$0xf]
    %v1448 = vunpack.c.l.b16 %v1320
    %v1449 = vunpack.c.l.b16 %v1321
    %v1450 = vunpack.c.l.b16 %v1322
    %v1451 = vunpack.c.l.b16 %v1323
    %v1452 = vunpack.c.l.b16 %v1324
    %v1453 = vunpack.c.l.b16 %v1325
    %v1454 = vunpack.c.l.b16 %v1326
    %v1455 = vunpack.c.l.b16 %v1327
    %v1456 = vunpack.c.l.b16 %v1328
    %v1457 = vunpack.c.l.b16 %v1329
    %v1458 = vunpack.c.l.b16 %v1330
    %v1459 = vunpack.c.l.b16 %v1331
    %v1460 = vunpack.c.l.b16 %v1332
    %v1461 = vunpack.c.l.b16 %v1333
    %v1462 = vunpack.c.l.b16 %v1334
    %v1463 = vunpack.c.l.b16 %v1335
    %v1464 = vunpack.c.l.b16 %v1336
    %v1465 = vunpack.c.l.b16 %v1337
    %v1466 = vunpack.c.l.b16 %v1338
    %v1467 = vunpack.c.l.b16 %v1339
    %v1468 = vunpack.c.l.b16 %v1340
    %v1469 = vunpack.c.l.b16 %v1341
    %v1470 = vunpack.c.l.b16 %v1342
    %v1471 = vunpack.c.l.b16 %v1343
    %v1472 = vunpack.c.l.b16 %v1344
    %v1473 = vunpack.c.l.b16 %v1345
    %v1474 = vunpack.c.l.b16 %v1346
    %v1475 = vunpack.c.l.b16 %v1347
    %v1476 = vunpack.c.l.b16 %v1348
    %v1477 = vunpack.c.l.b16 %v1349
    %v1478 = vunpack.c.l.b16 %v1350
    %v1479 = vunpack.c.l.b16 %v1351
    %v1480 = vunpack.c.l.b16 %v1352
    %v1481 = vunpack.c.l.b16 %v1353
    %v1482 = vunpack.c.l.b16 %v1354
    %v1483 = vunpack.c.l.b16 %v1355
    %v1484 = vunpack.c.l.b16 %v1356
    %v1485 = vunpack.c.l.b16 %v1357
    %v1486 = vunpack.c.l.b16 %v1358
    %v1487 = vunpack.c.l.b16 %v1359
    %v1488 = vunpack.c.l.b16 %v1360
    %v1489 = vunpack.c.l.b16 %v1361
    %v1490 = vunpack.c.l.b16 %v1362
    %v1491 = vunpack.c.l.b16 %v1363
    %v1492 = vunpack.c.l.b16 %v1364
    %v1493 = vunpack.c.l.b16 %v1365
    %v1494 = vunpack.c.l.b16 %v1366
    %v1495 = vunpack.c.l.b16 %v1367
    %v1496 = vunpack.c.l.b16 %v1368
    %v1497 = vunpack.c.l.b16 %v1369
    %v1498 = vunpack.c.l.b16 %v1370
    %v1499 = vunpack.c.l.b16 %v1371
    %v1500 = vunpack.c.l.b16 %v1372
    %v1501 = vunpack.c.l.b16 %v1373
    %v1502 = vunpack.c.l.b16 %v1374
    %v1503 = vunpack.c.l.b16 %v1375
    %v1504 = vunpack.c.l.b16 %v1376
    %v1505 = vunpack.c.l.b16 %v1377
    %v1506 = vunpack.c.l.b16 %v1378
    %v1507 = vunpack.c.l.b16 %v1379
    %v1508 = vunpack.c.l.b16 %v1380
    %v1509 = vunpack.c.l.b16 %v1381
    %v1510 = vunpack.c.l.b16 %v1382
    %v1511 = vunpack.c.l.b16 %v1383
    %v1512 = vpack.c.b16 %v1449, %v1448
    %v1513 = vpack.c.b16 %v1451, %v1450
    %v1514 = vpack.c.b16 %v1453, %v1452
    %v1515 = vpack.c.b16 %v1455, %v1454
    %v1516 = vpack.c.b16 %v1457, %v1456
    %v1517 = vpack.c.b16 %v1459, %v1458
    %v1518 = vpack.c.b16 %v1461, %v1460
    %v1519 = vpack.c.b16 %v1463, %v1462
    %v1520 = vpack.c.b16 %v1465, %v1464
    %v1521 = vpack.c.b16 %v1467, %v1466
    %v1522 = vpack.c.b16 %v1469, %v1468
    %v1523 = vpack.c.b16 %v1471, %v1470
    %v1524 = vpack.c.b16 %v1473, %v1472
    %v1525 = vpack.c.b16 %v1475, %v1474
    %v1526 = vpack.c.b16 %v1477, %v1476
    %v1527 = vpack.c.b16 %v1479, %v1478
    %v1528 = vpack.c.b16 %v1481, %v1480
    %v1529 = vpack.c.b16 %v1483, %v1482
    %v1530 = vpack.c.b16 %v1485, %v1484
    %v1531 = vpack.c.b16 %v1487, %v1486
    %v1532 = vpack.c.b16 %v1489, %v1488
    %v1533 = vpack.c.b16 %v1491, %v1490
    %v1534 = vpack.c.b16 %v1493, %v1492
    %v1535 = vpack.c.b16 %v1495, %v1494
    %v1536 = vpack.c.b16 %v1497, %v1496
    %v1537 = vpack.c.b16 %v1499, %v1498
    %v1538 = vpack.c.b16 %v1501, %v1500
    %v1539 = vpack.c.b16 %v1503, %v1502
    %v1540 = vpack.c.b16 %v1505, %v1504
    %v1541 = vpack.c.b16 %v1507, %v1506
    %v1542 = vpack.c.b16 %v1509, %v1508
    %v1543 = vpack.c.b16 %v1511, %v1510
    %1576 = vmatprep.subr.bf16.mxu0 0
    %1577 = vmatpush1.bf16.msra.mxu0 %v1512
    %1578 = vmatprep.subr.bf16.mxu0 0
    %1579 = vmatpush1.bf16.msra.mxu0 %v1513
    %1580 = vmatprep.subr.bf16.mxu0 0
    %1581 = vmatpush1.bf16.msra.mxu0 %v1514
    %1582 = vmatprep.subr.bf16.mxu0 0
    %1583 = vmatpush1.bf16.msra.mxu0 %v1515
    %1584 = vmatprep.subr.bf16.mxu0 0
    %1585 = vmatpush1.bf16.msra.mxu0 %v1516
    %1586 = vmatprep.subr.bf16.mxu0 0
    %1587 = vmatpush1.bf16.msra.mxu0 %v1517
    %1588 = vmatprep.subr.bf16.mxu0 0
    %1589 = vmatpush1.bf16.msra.mxu0 %v1518
    %1590 = vmatprep.subr.bf16.mxu0 0
    %1591 = vmatpush1.bf16.msra.mxu0 %v1519
    %1592 = vmatprep.subr.bf16.mxu0 0
    %1593 = vmatpush1.bf16.msra.mxu0 %v1520
    %1594 = vmatprep.subr.bf16.mxu0 0
    %1595 = vmatpush1.bf16.msra.mxu0 %v1521
    %1596 = vmatprep.subr.bf16.mxu0 0
    %1597 = vmatpush1.bf16.msra.mxu0 %v1522
    %1598 = vmatprep.subr.bf16.mxu0 0
    %1599 = vmatpush1.bf16.msra.mxu0 %v1523
    %1600 = vmatprep.subr.bf16.mxu0 0
    %1601 = vmatpush1.bf16.msra.mxu0 %v1524
    %1602 = vmatprep.subr.bf16.mxu0 0
    %1603 = vmatpush1.bf16.msra.mxu0 %v1525
    %1604 = vmatprep.subr.bf16.mxu0 0
    %1605 = vmatpush1.bf16.msra.mxu0 %v1526
    %1606 = vmatprep.subr.bf16.mxu0 0
    %1607 = vmatpush1.bf16.msra.mxu0 %v1527
    %1608 = vmatprep.mubr.bf16.mxu0 %v1313
    %1609 = vmatmul.mubr.bf16.gmra.mrb[0].mxu0 %v1312
    %v1610 = vpop.f32.mrb[0].mxu0
    %v1611 = vadd.f32 0.0, %v1610
    %v1612 = vpop.f32.mrb[0].mxu0
    %v1613 = vpop.f32.mrb[0].mxu0
    %v1614 = vadd.f32 0.0, %v1613
    %v1615 = vpop.f32.mrb[0].mxu0
    %1616 = vmatprep.mubr.bf16.mxu0 %v1317
    %1617 = vmatmul.mubr.bf16.gmra.mrb[0].mxu0 %v1316
    %v1618 = vpop.f32.mrb[0].mxu0
    %v1619 = vadd.f32 0.0, %v1618
    %v1620 = vpop.f32.mrb[0].mxu0
    %v1621 = vpop.f32.mrb[0].mxu0
    %v1622 = vadd.f32 0.0, %v1621
    %v1623 = vpop.f32.mrb[0].mxu0
    %1624 = vdwg.mxu0
    %1625 = vmatprep.subr.bf16.mxu0 0
    %1626 = vmatpush1.bf16.msra.mxu0 %v1528
    %1627 = vmatprep.subr.bf16.mxu0 0
    %1628 = vmatpush1.bf16.msra.mxu0 %v1529
    %1629 = vmatprep.subr.bf16.mxu0 0
    %1630 = vmatpush1.bf16.msra.mxu0 %v1530
    %1631 = vmatprep.subr.bf16.mxu0 0
    %1632 = vmatpush1.bf16.msra.mxu0 %v1531
    %1633 = vmatprep.subr.bf16.mxu0 0
    %1634 = vmatpush1.bf16.msra.mxu0 %v1532
    %1635 = vmatprep.subr.bf16.mxu0 0
    %1636 = vmatpush1.bf16.msra.mxu0 %v1533
    %1637 = vmatprep.subr.bf16.mxu0 0
    %1638 = vmatpush1.bf16.msra.mxu0 %v1534
    %1639 = vmatprep.subr.bf16.mxu0 0
    %1640 = vmatpush1.bf16.msra.mxu0 %v1535
    %1641 = vmatprep.subr.bf16.mxu0 0
    %1642 = vmatpush1.bf16.msra.mxu0 %v1536
    %1643 = vmatprep.subr.bf16.mxu0 0
    %1644 = vmatpush1.bf16.msra.mxu0 %v1537
    %1645 = vmatprep.subr.bf16.mxu0 0
    %1646 = vmatpush1.bf16.msra.mxu0 %v1538
    %1647 = vmatprep.subr.bf16.mxu0 0
    %1648 = vmatpush1.bf16.msra.mxu0 %v1539
    %1649 = vmatprep.subr.bf16.mxu0 0
    %1650 = vmatpush1.bf16.msra.mxu0 %v1540
    %1651 = vmatprep.subr.bf16.mxu0 0
    %1652 = vmatpush1.bf16.msra.mxu0 %v1541
    %1653 = vmatprep.subr.bf16.mxu0 0
    %1654 = vmatpush1.bf16.msra.mxu0 %v1542
    %1655 = vmatprep.subr.bf16.mxu0 0
    %1656 = vmatpush1.bf16.msra.mxu0 %v1543
    %1657 = vmatprep.mubr.bf16.mxu0 %v1315
    %1658 = vmatmul.mubr.bf16.gmra.mrb[0].mxu0 %v1314
    %v1659 = vpop.f32.mrb[0].mxu0
    %v1660 = vadd.f32 %v1611, %v1659
    %v1661 = vpop.f32.mrb[0].mxu0
    %v1662 = vpop.f32.mrb[0].mxu0
    %v1663 = vadd.f32 %v1614, %v1662
    %v1664 = vpop.f32.mrb[0].mxu0
    %1665 = vmatprep.mubr.bf16.mxu0 %v1319
    %1666 = vmatmul.mubr.bf16.gmra.mrb[0].mxu0 %v1318
    %v1667 = vpop.f32.mrb[0].mxu0
    %v1668 = vadd.f32 %v1619, %v1667
    %v1669 = vpop.f32.mrb[0].mxu0
    %v1670 = vpop.f32.mrb[0].mxu0
    %v1671 = vadd.f32 %v1622, %v1670
    %v1672 = vpop.f32.mrb[0].mxu0
    %1673 = vdwg.mxu0
    %v1674 = vadd.f32 %v864, %v1660
    %v1675 = vadd.f32 %v865, %v1663
    %v1676 = vadd.f32 %v866, %v1668
    %v1677 = vadd.f32 %v867, %v1671
    %v1678 = vadd.f32 %v1674, %v1675
    %v1679 = vrot.slane %v1678, 4
    %v1680 = vadd.f32 %v1678, %v1679
    %v1681 = vrot.slane %v1680, 2
    %v1682 = vadd.f32 %v1680, %v1681
    %v1683 = vrot.slane %v1682, 1
    %v1684 = vadd.f32 %v1682, %v1683
    %v1685 = vadd.f32 %v1676, %v1677
    %v1686 = vrot.slane %v1685, 4
    %v1687 = vadd.f32 %v1685, %v1686
    %v1688 = vrot.slane %v1687, 2
    %v1689 = vadd.f32 %v1687, %v1688
    %v1690 = vrot.slane %v1689, 1
    %v1691 = vadd.f32 %v1689, %v1690
    %v1692 = vrcp.pop 16.0
    %v1693 = vmul.f32 %v1684, %v1692
    %v1694 = vmul.f32 %v1691, %v1692
    %v1695 = vld [vmem:[%s2] sm:$0x1]
    %v1696 = vld [vmem:[#allocation8] sm:$0xf]
    %v1697 = vld [vmem:[#allocation8 + $0x4] sm:$0xf]
    %v1698 = vld [vmem:[#allocation8 + $0x8] sm:$0xf]
    %v1699 = vld [vmem:[#allocation8 + $0xc] sm:$0xf]
    %v1700 = vld [vmem:[#allocation8 + $0x10] sm:$0xf]
    %v1701 = vld [vmem:[#allocation8 + $0x14] sm:$0xf]
    %v1702 = vld [vmem:[#allocation8 + $0x18] sm:$0xf]
    %v1703 = vld [vmem:[#allocation8 + $0x1c] sm:$0xf]
    %v1704 = vld [vmem:[#allocation8 + $0x20] sm:$0xf]
    %v1705 = vld [vmem:[#allocation8 + $0x24] sm:$0xf]
    %v1706 = vld [vmem:[#allocation8 + $0x28] sm:$0xf]
    %v1707 = vld [vmem:[#allocation8 + $0x2c] sm:$0xf]
    %v1708 = vld [vmem:[#allocation8 + $0x30] sm:$0xf]
    %v1709 = vld [vmem:[#allocation8 + $0x34] sm:$0xf]
    %v1710 = vld [vmem:[#allocation8 + $0x38] sm:$0xf]
    %v1711 = vld [vmem:[#allocation8 + $0x3c] sm:$0xf]
    %v1728 = vunpack.c.l.b16 %v1696
    %v1729 = vunpack.c.l.b16 %v1697
    %v1730 = vunpack.c.l.b16 %v1698
    %v1731 = vunpack.c.l.b16 %v1699
    %v1732 = vunpack.c.l.b16 %v1700
    %v1733 = vunpack.c.l.b16 %v1701
    %v1734 = vunpack.c.l.b16 %v1702
    %v1735 = vunpack.c.l.b16 %v1703
    %v1736 = vunpack.c.l.b16 %v1704
    %v1737 = vunpack.c.l.b16 %v1705
    %v1738 = vunpack.c.l.b16 %v1706
    %v1739 = vunpack.c.l.b16 %v1707
    %v1740 = vunpack.c.l.b16 %v1708
    %v1741 = vunpack.c.l.b16 %v1709
    %v1742 = vunpack.c.l.b16 %v1710
    %v1743 = vunpack.c.l.b16 %v1711
    %v1744 = vpack.c.b16 %v1729, %v1728
    %v1745 = vpack.c.b16 %v1731, %v1730
    %v1746 = vpack.c.b16 %v1733, %v1732
    %v1747 = vpack.c.b16 %v1735, %v1734
    %v1748 = vpack.c.b16 %v1737, %v1736
    %v1749 = vpack.c.b16 %v1739, %v1738
    %v1750 = vpack.c.b16 %v1741, %v1740
    %v1751 = vpack.c.b16 %v1743, %v1742
    %1760 = vmatprep.subr.bf16.mxu0 0
    %1761 = vmatpush1.bf16.msra.mxu0 %v1744
    %1762 = vmatprep.subr.bf16.mxu0 0
    %1763 = vmatpush1.bf16.msra.mxu0 %v1745
    %1764 = vmatprep.subr.bf16.mxu0 0
    %1765 = vmatpush1.bf16.msra.mxu0 %v1746
    %1766 = vmatprep.subr.bf16.mxu0 0
    %1767 = vmatpush1.bf16.msra.mxu0 %v1747
    %1768 = vmatprep.subr.bf16.mxu0 0
    %1769 = vmatpush1.bf16.msra.mxu0 %v1748
    %1770 = vmatprep.subr.bf16.mxu0 0
    %1771 = vmatpush1.bf16.msra.mxu0 %v1749
    %1772 = vmatprep.subr.bf16.mxu0 0
    %1773 = vmatpush1.bf16.msra.mxu0 %v1750
    %1774 = vmatprep.subr.bf16.mxu0 0
    %1775 = vmatpush1.bf16.msra.mxu0 %v1751
    %1776 = vmatprep.subr.bf16.mxu0 0
    %1777 = vmatpush1.bf16.msra.mxu0 0
    %1778 = vmatprep.subr.bf16.mxu0 0
    %1779 = vmatpush1.bf16.msra.mxu0 0
    %1780 = vmatprep.subr.bf16.mxu0 0
    %1781 = vmatpush1.bf16.msra.mxu0 0
    %1782 = vmatprep.subr.bf16.mxu0 0
    %1783 = vmatpush1.bf16.msra.mxu0 0
    %1784 = vmatprep.subr.bf16.mxu0 0
    %1785 = vmatpush1.bf16.msra.mxu0 0
    %1786 = vmatprep.subr.bf16.mxu0 0
    %1787 = vmatpush1.bf16.msra.mxu0 0
    %1788 = vmatprep.subr.bf16.mxu0 0
    %1789 = vmatpush1.bf16.msra.mxu0 0
    %1790 = vmatprep.subr.bf16.mxu0 0
    %1791 = vmatpush1.bf16.msra.mxu0 0
    %1792 = vmatprep.mubr.bf16.mxu0 0
    %1793 = vmatmul.mubr.bf16.gmra.mrb[0].mxu0 %v1695
    %v1794 = vpop.f32.mrb[0].mxu0
    %v1795 = vadd.f32 0.0, %v1794
    %v1796 = vpop.f32.mrb[0].mxu0
    %v1797 = vpop.f32.mrb[0].mxu0
    %v1798 = vpop.f32.mrb[0].mxu0
    %1799 = vdwg.mxu0
    %v1800 = vtanh.pop %v1795
    %v1801 = vld [vmem:[%s3] sm:$0xf]
    %1802 = vmatprep.subr.bf16.mxu0 0
    %1803 = vmatpush1.bf16.msra.mxu0 %v1744
    %1804 = vmatprep.subr.bf16.mxu0 0
    %1805 = vmatpush1.bf16.msra.mxu0 %v1745
    %1806 = vmatprep.subr.bf16.mxu0 0
    %1807 = vmatpush1.bf16.msra.mxu0 %v1746
    %1808 = vmatprep.subr.bf16.mxu0 0
    %1809 = vmatpush1.bf16.msra.mxu0 %v1747
    %1810 = vmatprep.subr.bf16.mxu0 0
    %1811 = vmatpush1.bf16.msra.mxu0 %v1748
    %1812 = vmatprep.subr.bf16.mxu0 0
    %1813 = vmatpush1.bf16.msra.mxu0 %v1749
    %1814 = vmatprep.subr.bf16.mxu0 0
    %1815 = vmatpush1.bf16.msra.mxu0 %v1750
    %1816 = vmatprep.subr.bf16.mxu0 0
    %1817 = vmatpush1.bf16.msra.mxu0 %v1751
    %1818 = vmatprep.subr.bf16.mxu0 0
    %1819 = vmatpush1.bf16.msra.mxu0 0
    %1820 = vmatprep.subr.bf16.mxu0 0
    %1821 = vmatpush1.bf16.msra.mxu0 0
    %1822 = vmatprep.subr.bf16.mxu0 0
    %1823 = vmatpush1.bf16.msra.mxu0 0
    %1824 = vmatprep.subr.bf16.mxu0 0
    %1825 = vmatpush1.bf16.msra.mxu0 0
    %1826 = vmatprep.subr.bf16.mxu0 0
    %1827 = vmatpush1.bf16.msra.mxu0 0
    %1828 = vmatprep.subr.bf16.mxu0 0
    %1829 = vmatpush1.bf16.msra.mxu0 0
    %1830 = vmatprep.subr.bf16.mxu0 0
    %1831 = vmatpush1.bf16.msra.mxu0 0
    %1832 = vmatprep.subr.bf16.mxu0 0
    %1833 = vmatpush1.bf16.msra.mxu0 0
    %1834 = vmatprep.mubr.bf16.mxu0 0
    %1835 = vmatmul.mubr.bf16.gmra.mrb[0].mxu0 %v1801
    %v1836 = vpop.f32.mrb[0].mxu0
    %v1837 = vadd.f32 0.0, %v1836
    %v1838 = vpop.f32.mrb[0].mxu0
    %v1839 = vpop.f32.mrb[0].mxu0
    %v1840 = vpop.f32.mrb[0].mxu0
    %1841 = vdwg.mxu0
    %v1842 = vtanh.pop %v1837
    %v1844 = vcombine.high %v1842, %v1842
    %v1847 = vrot.slane %v1800, 1
    %v1850 = vmul.f32 %v1693, %v1800
    %v1851 = vmul.f32 %v1694, %v1847
    %v1854 = vrot.slane %v1851, 7
    %vm1855 = vcmask 1041409
    %v1856 = vsel %vm1855, %v1854, %v1850
    %vm1858 = vcmask 1041408
    %v1859 = vsel %vm1858, %v1856, 0.0
    %1860 = vadd.xlane.f32.xlu0 %v1859
    %v1861 = vpop.xlane.xlu0 %1860
    %v1862 = vmul.f32 %v1693, %v1842
    %v1863 = vmul.f32 %v1694, %v1844
    %vm1864 = vcmask 1043456
    %v1865 = vsel %vm1864, %v1862, 0.0
    %1866 = vadd.xlane.f32.xlu0 %v1865
    %v1867 = vpop.xlane.xlu0 %1866
    %v1868 = vsel %vm1864, %v1863, 0.0
    %1869 = vadd.xlane.f32.xlu0 %v1868
    %v1870 = vpop.xlane.xlu0 %1869
    %v1873 = vlaneseq
    %v1874 = vand.u32 %v1873, 127
    %v1875 = vlaneseq
    %v1876 = vshrl.u32 %v1875, 7
    %v1877 = vsub.s32 %v1874, %v1876
    %v1878 = vrot.slane %v1867, %v1877
    %v1879 = vlaneseq
    %v1880 = vshrl.u32 %v1879, 7
    %v1881 = vsub.s32 %v1874, %v1880
    %v1882 = vrot.slane %v1870, %v1881
    %v1883 = vsel %vm1855, %v1882, %v1878
    %vm1885 = vcmask 25600
    %v1886 = vsel %vm1885, %v1883, 0.0
    %1887 = vadd.xlane.f32.xlu0 %v1886
    %v1888 = vpop.xlane.xlu0 %1887
    %v1889 = vrcp.pop 4.0
    %v1890 = vmul.f32 %v1888, %v1889
    %v1891 = vsub.f32 0.0, %v1861
    %v1892 = vmax.f32 %v1891, 0.0
    %v1893 = vand.u32 2147483647, %v1891
    %v1894 = vsub.f32 0.0, %v1893
    %v1895 = vmul.f32 %v1894, 1.442695
    %v1896 = vpow.pop %v1895
    %v1897 = vadd.f32 %v1896, 1.0
    %v1898 = vlog2.pop %v1897
    %v1899 = vmul.f32 %v1898, 0.6931472
    %v1900 = vmul.f32 -0.5, %v1896
    %v1901 = vadd.f32 %v1900, 1.0
    %v1902 = vmul.f32 %v1901, %v1896
    %v1903 = vand.u32 2147483647, %v1896
    %vm1904 = vcmp.lt.f32.partialorder %v1903, 0.0004427343
    %v1905 = vsel %vm1904, %v1902, %v1899
    %v1906 = vadd.f32 %v1892, %v1905
    %vm1907 = vcmask 1024
    %v1908 = vsel %vm1907, %v1906, 0.0
    %1909 = vadd.xlane.f32.xlu0 %v1908
    %v1910 = vpop.xlane.xlu0 %1909
    %v1911 = vrot.slane %v1910, 4
    %v1912 = vadd.f32 %v1910, %v1911
    %v1913 = vrot.slane %v1912, 2
    %v1914 = vadd.f32 %v1912, %v1913
    %v1915 = vrot.slane %v1914, 1
    %v1916 = vadd.f32 %v1914, %v1915
    %s1917 = vtos %v1916
    %v1918 = vrcp.pop 2.0
    %s1919 = vtos %v1918
    %s1920 = smul.f32 %s1917, %s1919
    %v1921 = vmax.f32 %v1890, 0.0
    %v1922 = vand.u32 2147483647, %v1890
    %v1923 = vsub.f32 0.0, %v1922
    %v1924 = vmul.f32 %v1923, 1.442695
    %v1925 = vpow.pop %v1924
    %v1926 = vadd.f32 %v1925, 1.0
    %v1927 = vlog2.pop %v1926
    %v1928 = vmul.f32 %v1927, 0.6931472
    %v1929 = vmul.f32 -0.5, %v1925
    %v1930 = vadd.f32 %v1929, 1.0
    %v1931 = vmul.f32 %v1930, %v1925
    %v1932 = vand.u32 2147483647, %v1925
    %vm1933 = vcmp.lt.f32.partialorder %v1932, 0.0004427343
    %v1934 = vsel %vm1933, %v1931, %v1928
    %v1935 = vadd.f32 %v1921, %v1934
    %v1936 = vsel %vm1907, %v1935, 0.0
    %1937 = vadd.xlane.f32.xlu0 %v1936
    %v1938 = vpop.xlane.xlu0 %1937
    %v1939 = vrot.slane %v1938, 4
    %v1940 = vadd.f32 %v1938, %v1939
    %v1941 = vrot.slane %v1940, 2
    %v1942 = vadd.f32 %v1940, %v1941
    %v1943 = vrot.slane %v1942, 1
    %v1944 = vadd.f32 %v1942, %v1943
    %s1945 = vtos %v1944
    %v1946 = vrcp.pop 2.0
    %s1947 = vtos %v1946
    %s1948 = smul.f32 %s1945, %s1947
    %s1949 = sadd.f32 %s1920, %s1948
    %v1950 = vstv %s1949
    %vm1951 = vcmask 0
    %1952 = vst.msk [vmem:[#allocation10] sm:$0x1] %vm1951, %v1950
    // Predicated region
    $region66: #{vit_urc_forward.1} parent=1 // pred_check
      _
    $region67: #{vit_urc_forward.1} parent=1 // pred_check_branch
      %1954 = sbr.rel (0) target = $region69
    $region68: #{vit_urc_forward.1} parent=1 // pred_region
      %s1956 = ssub.s32 16, 16
      %1957 = vsyncadd [#allocation4], %s1956
      %s1959 = sshll.u32 [#allocation10], 4
      %s1960 = int_to_ptr.vmem [resolvable:$true] %s1959
      %1962 = dma.vmem_to_hbm [thread:$0]  %s1960, 16, %s12, [#allocation4]
    $region69: #{vit_urc_forward.1} parent=1 // pred_fallthru
      _
    // Predicated region
    $region70: #{vit_urc_forward.1} parent=1 // pred_check
      _
    $region71: #{vit_urc_forward.1} parent=1 // pred_check_branch
      %1964 = sbr.rel (0) target = $region73
    $region72: #{vit_urc_forward.1} parent=1 // pred_region
      %1965 = dma.done [#allocation4], 16
    $region73: #{vit_urc_forward.1} parent=1 // pred_fallthru
      _
    %1966 = vsyncpa [#allocation3], 1
    %1967 = vsyncpa [#allocation6], 1
    %1968 = vsyncpa [#allocation9], 1
    %1969 = vsyncpa [#allocation4], 1

</llo_original>
